<compile_context>
chip_gen: v5e
topology: v5e:2x2
jax: 0.10.0
libtpu: 0.0.40
codegen_flags: <defaults>
</compile_context>

<pallas_src>
import functools

import jax
import jax.numpy as jnp
from jax.experimental import pallas as pl
from jax.experimental.pallas import tpu as pltpu


NEG_BIG = -1e30          # additive "minus infinity" for masked logits
LEAKY_SLOPE = 0.2        # PyG GATConv default negative_slope


# ---------------------------------------------------------------------------
# Kernel bodies
# ---------------------------------------------------------------------------
def _attention_math(h_bf16, adst, asrc, cnt_i8, bias, out_dtype):
    """Shared masked-softmax attention + aggregation math.

    h_bf16 : [S, D]  bf16  transformed features of all source nodes
    adst   : [T, 1]  f32   per-destination attention scalar (this row tile)
    asrc   : [1, S]  f32   per-source attention scalar
    cnt_i8 : [T, S]  int8  edge multiplicity (0 = no edge); count weighting
                           reproduces PyG's edge-list softmax with duplicates
    bias   : [1, D]  f32
    """
    cnt = cnt_i8.astype(jnp.float32)                          # [T, S]
    logits = adst + asrc                                      # [T, S] f32
    e = jnp.maximum(logits, LEAKY_SLOPE * logits)             # LeakyReLU, 1 vmax
    # Mask only for the stable row max; the count factor below already zeroes
    # non-edges in the numerator.
    e = jnp.where(cnt > 0.0, e, NEG_BIG)
    e_max = jnp.max(e, axis=-1, keepdims=True)
    # TODO(synk): on v6e/v7x this [T,S] slab + exp could run in bf16 for ~2x
    # VPU/EUP throughput; kept f32 so the same kernel is also optimal on v5e
    # (no bf16 VPU/EUP) and numerics stay tight.
    p = cnt * jnp.exp(e - e_max)                              # [T, S] f32, 0 off-edge
    denom = jnp.sum(p, axis=-1, keepdims=True)                # [T, 1]
    # Aggregate un-normalized on the MXU with bf16 operands (f32 accumulation),
    # then normalize the small [T, D] result with an approx (EUP) reciprocal.
    agg = jnp.dot(p.astype(jnp.bfloat16), h_bf16,
                  preferred_element_type=jnp.float32)         # [T, D] f32
    out = agg * pl.reciprocal(denom, approx=True) + bias
    return jnp.tanh(out).astype(out_dtype)


def project_kernel(x_ref, w_ref, h_ref):
    # x: [TM, Din_pad] bf16, w: [Din_pad, D_pad] bf16 -> h: [TM, D_pad] bf16
    h_ref[...] = jnp.dot(x_ref[...], w_ref[...],
                         preferred_element_type=jnp.float32).astype(h_ref.dtype)


def attention_kernel(h_ref, adst_ref, asrc_ref, cnt_ref, bias_ref, o_ref):
    o_ref[...] = _attention_math(h_ref[...], adst_ref[...], asrc_ref[...],
                                 cnt_ref[...], bias_ref[...], o_ref.dtype)


def fused_kernel(x_ref, w_ref, adst_ref, asrc_ref, cnt_ref, bias_ref, o_ref):
    # Single-step path for small graphs: H never round-trips through HBM.
    h = jnp.dot(x_ref[...], w_ref[...], preferred_element_type=jnp.float32)
    o_ref[...] = _attention_math(h.astype(jnp.bfloat16), adst_ref[...],
                                 asrc_ref[...], cnt_ref[...], bias_ref[...],
                                 o_ref.dtype)


# ---------------------------------------------------------------------------
# Wrapper
# ---------------------------------------------------------------------------
def _round_up(x, m):
    return (x + m - 1) // m * m


def _const_spec(shape, index_map, single_buffer):
    """BlockSpec for a block whose index never changes across the grid."""
    if single_buffer:
        # Single buffer: no 2x VMEM for blocks that are never re-fetched.
        return pl.BlockSpec(shape, index_map, pipeline_mode=pl.Buffered(1))
    return pl.BlockSpec(shape, index_map)


@functools.partial(jax.jit,
                   static_argnames=("tm", "fuse_threshold", "single_buffer"))
def _breadth_forward(x, edge_index, w, att_src, att_dst, bias, *,
                     tm=256, fuse_threshold=512, single_buffer=True):
    """x: [N, in_dim] f32, edge_index: [2, E] i32 (row0=src, row1=dst)."""
    N, din = x.shape
    dout = w.shape[0]
    assert tm % 128 == 0

    din_pad = _round_up(din, 128)
    d_pad = _round_up(dout, 128)              # lane-dense output features
    n_pad = _round_up(N, 128)                 # lane-dense source/node axis
    tm_eff = min(tm, n_pad)
    n_pad = _round_up(n_pad, tm_eff)

    # --- tiny f32 glue in XLA ------------------------------------------------
    w_t = jnp.transpose(w).astype(jnp.float32)                 # [din, dout]
    v_src = w_t @ att_src.astype(jnp.float32)                  # [din]
    v_dst = w_t @ att_dst.astype(jnp.float32)
    # Attention scalars in full f32 (keeps the softmax logits exact even
    # though H is shipped to the attention kernel in bf16).
    a_src_row = jnp.zeros((1, n_pad), jnp.float32).at[0, :N].set(x @ v_src)
    a_dst_col = jnp.zeros((n_pad, 1), jnp.float32).at[:N, 0].set(x @ v_dst)

    x_pad = jnp.zeros((n_pad, din_pad), jnp.float32).at[:N, :din].set(x)
    x_bf16 = x_pad.astype(jnp.bfloat16)
    w_bf16 = (jnp.zeros((din_pad, d_pad), jnp.float32)
              .at[:din, :dout].set(w_t).astype(jnp.bfloat16))
    bias_pad = jnp.zeros((1, d_pad), jnp.float32).at[0, :dout].set(bias)

    # Edge-multiplicity matrix cnt[dst, src].  GATConv removes existing self
    # loops then adds exactly one per node, so the diagonal is forced to 1.
    # int8 halves the only O(N^2) HBM stream vs a bf16 additive mask.
    # TODO(synk): bit-pack (16x) or switch to CSR via PrefetchScalarGridSpec
    # for very large / very sparse graphs.
    src, dst = edge_index[0], edge_index[1]
    cnt = jnp.zeros((n_pad, n_pad), jnp.int32).at[dst, src].add(1)
    idx = jnp.arange(N)
    cnt = cnt.at[idx, idx].set(1)
    cnt_i8 = jnp.minimum(cnt, 127).astype(jnp.int8)

    if n_pad <= fuse_threshold:
        # ---- Small graph: one fused step (projection + attention). ----------
        out_pad = pl.pallas_call(
            fused_kernel,
            out_shape=jax.ShapeDtypeStruct((n_pad, d_pad), jnp.float32),
            grid_spec=pltpu.PrefetchScalarGridSpec(
                num_scalar_prefetch=0,
                grid=(1,),
                in_specs=[
                    pl.BlockSpec((n_pad, din_pad), lambda i: (0, 0)),
                    pl.BlockSpec((din_pad, d_pad), lambda i: (0, 0)),
                    pl.BlockSpec((n_pad, 1), lambda i: (0, 0)),
                    pl.BlockSpec((1, n_pad), lambda i: (0, 0)),
                    pl.BlockSpec((n_pad, n_pad), lambda i: (0, 0)),
                    pl.BlockSpec((1, d_pad), lambda i: (0, 0)),
                ],
                out_specs=pl.BlockSpec((n_pad, d_pad), lambda i: (0, 0)),
            ),
            compiler_params=pltpu.CompilerParams(
                dimension_semantics=("arbitrary",)),
        )(x_bf16, w_bf16, a_dst_col, a_src_row, cnt_i8, bias_pad)
        return out_pad[:N, :dout]

    grid = (n_pad // tm_eff,)

    # ---- Kernel 1: H = x @ W^T, bf16 operands, f32 accumulation, bf16 out. --
    h_bf16 = pl.pallas_call(
        project_kernel,
        out_shape=jax.ShapeDtypeStruct((n_pad, d_pad), jnp.bfloat16),
        grid_spec=pltpu.PrefetchScalarGridSpec(
            num_scalar_prefetch=0,
            grid=grid,
            in_specs=[
                pl.BlockSpec((tm_eff, din_pad), lambda i: (i, 0)),
                _const_spec((din_pad, d_pad), lambda i: (0, 0), single_buffer),
            ],
            out_specs=pl.BlockSpec((tm_eff, d_pad), lambda i: (i, 0)),
        ),
        compiler_params=pltpu.CompilerParams(dimension_semantics=("parallel",)),
    )(x_bf16, w_bf16)

    # VMEM budget for the attention kernel (worst case: everything double
    # buffered); raise the scoped limit only when it might not fit.
    est_bytes = 2 * (n_pad * d_pad * 2           # full bf16 H
                     + tm_eff * n_pad            # int8 count tile
                     + tm_eff * d_pad * 4        # f32 out tile
                     + n_pad * 4 + tm_eff * 4 + d_pad * 4)
    vmem_limit = None
    if est_bytes > (24 << 20):
        vmem_limit = int(min(est_bytes + (8 << 20), 112 << 20))
    # TODO(synk): when est_bytes approaches physical VMEM (~16-20K nodes on
    # v7x's 64 MiB) switch to a flash-style second grid axis over source tiles
    # with online softmax.

    # ---- Kernel 2: masked softmax attention + aggregation, tiled over dst. --
    out_pad = pl.pallas_call(
        attention_kernel,
        out_shape=jax.ShapeDtypeStruct((n_pad, d_pad), jnp.float32),
        grid_spec=pltpu.PrefetchScalarGridSpec(
            num_scalar_prefetch=0,
            grid=grid,
            in_specs=[
                _const_spec((n_pad, d_pad), lambda i: (0, 0), single_buffer),  # H
                pl.BlockSpec((tm_eff, 1), lambda i: (i, 0)),                   # a_dst tile
                _const_spec((1, n_pad), lambda i: (0, 0), single_buffer),      # a_src row
                pl.BlockSpec((tm_eff, n_pad), lambda i: (i, 0)),               # int8 counts
                _const_spec((1, d_pad), lambda i: (0, 0), single_buffer),      # bias
            ],
            out_specs=pl.BlockSpec((tm_eff, d_pad), lambda i: (i, 0)),
        ),
        compiler_params=pltpu.CompilerParams(
            dimension_semantics=("parallel",),
            vmem_limit_bytes=vmem_limit),
    )(h_bf16, a_dst_col, a_src_row, cnt_i8, bias_pad)

    return out_pad[:N, :dout]


_BUFFERED_ONE_OK = True   # flipped off if this JAX build rejects pl.Buffered(1)


def breadth_forward(x, edge_index, w, att_src, att_dst, bias, *,
                    tm=256, fuse_threshold=512):
    """Forward pass of Breadth = tanh(GATConv(x, edge_index)), heads=1."""
    global _BUFFERED_ONE_OK
    if _BUFFERED_ONE_OK:
        try:
            out = _breadth_forward(x, edge_index, w, att_src, att_dst, bias,
                                   tm=tm, fuse_threshold=fuse_threshold,
                                   single_buffer=True)
            return jax.block_until_ready(out)
        except Exception:  # noqa: BLE001 - fallback if pipeline_mode unsupported
            _BUFFERED_ONE_OK = False
    out = _breadth_forward(x, edge_index, w, att_src, att_dst, bias,
                           tm=tm, fuse_threshold=fuse_threshold,
                           single_buffer=False)
    return jax.block_until_ready(out)


# ---------------------------------------------------------------------------
# Pure-JAX f32 reference (PyG GATConv(heads=1) + tanh semantics, including
# duplicate-edge multiplicity in the edge softmax and forced single self loop)
# ---------------------------------------------------------------------------
def breadth_reference(x, edge_index, w, att_src, att_dst, bias):
    N = x.shape[0]
    src, dst = edge_index[0], edge_index[1]
    cnt = jnp.zeros((N, N), jnp.float32).at[dst, src].add(1.0)
    idx = jnp.arange(N)
    cnt = cnt.at[idx, idx].set(1.0)   # remove_self_loops + add_self_loops

    h = x @ w.T
    a_src = h @ att_src
    a_dst = h @ att_dst
    logits = a_dst[:, None] + a_src[None, :]
    e = jnp.where(logits > 0, logits, LEAKY_SLOPE * logits)
    e = jnp.where(cnt > 0, e, -jnp.inf)
    e = e - jnp.max(e, axis=-1, keepdims=True)
    num = cnt * jnp.exp(e)
    alpha = num / jnp.sum(num, axis=-1, keepdims=True)
    return jnp.tanh(alpha @ h + bias[None, :])


if __name__ == "__main__":
    def _make_inputs(key, n, e, in_dim, out_dim):
        k_x, k_e1, k_e2, k_w, k_as, k_ad = jax.random.split(key, 6)
        x = jax.random.normal(k_x, (n, in_dim), dtype=jnp.float32)
        edge_index = jnp.stack(
            [jax.random.randint(k_e1, (e,), 0, n, dtype=jnp.int32),
             jax.random.randint(k_e2, (e,), 0, n, dtype=jnp.int32)], axis=0)
        w = jax.random.normal(k_w, (out_dim, in_dim), jnp.float32) / jnp.sqrt(in_dim)
        att_src = jax.random.normal(k_as, (out_dim,), jnp.float32) / jnp.sqrt(out_dim)
        att_dst = jax.random.normal(k_ad, (out_dim,), jnp.float32) / jnp.sqrt(out_dim)
        bias = jnp.zeros((out_dim,), jnp.float32)
        return x, edge_index, w, att_src, att_dst, bias

    key = jax.random.PRNGKey(0)
    k1, k2 = jax.random.split(key)

    # Case 1: small graph (shipped module size) -> single fused kernel path.
    N, IN_DIM, OUT_DIM, E = 64, 32, 32, 200
    args = _make_inputs(k1, N, E, IN_DIM, OUT_DIM)
    out = breadth_forward(*args)
    ref = breadth_reference(*args)
    assert out.shape == (N, OUT_DIM)
    # bf16 MXU operands (f32 accumulation) -> relaxed vs the pure-f32 reference.
    assert jnp.allclose(out, ref, atol=2e-2, rtol=2e-2), "fused path mismatch"

    # Case 2: larger graph -> two-kernel row-tiled path (forced).
    N2, E2 = 300, 2000
    args2 = _make_inputs(k2, N2, E2, IN_DIM, OUT_DIM)
    out2 = breadth_forward(*args2, tm=128, fuse_threshold=0)
    ref2 = breadth_reference(*args2)
    assert out2.shape == (N2, OUT_DIM)
    assert jnp.allclose(out2, ref2, atol=2e-2, rtol=2e-2), "tiled path mismatch"

    print("KERNEL_OK")
</pallas_src>

<mosaic_0001>
module attributes {stable_mosaic.version = 11 : i64} {
  func.func @fused_kernel(%arg0: i32, %arg1: memref<128x128xbf16, #tpu.memory_space<vmem>>, %arg2: memref<128x128xbf16, #tpu.memory_space<vmem>>, %arg3: memref<128x1xf32, #tpu.memory_space<vmem>>, %arg4: memref<1x128xf32, #tpu.memory_space<vmem>>, %arg5: memref<128x128xi8, #tpu.memory_space<vmem>>, %arg6: memref<1x128xf32, #tpu.memory_space<vmem>>, %arg7: memref<128x128xf32, #tpu.memory_space<vmem>>) attributes {dimension_semantics = [#tpu.dimension_semantics<arbitrary>], iteration_bounds = array<i64: 1>, scalar_prefetch = 0 : i64, scratch_operands = 0 : i64, tpu.core_type = #tpu.core_type<tc>, window_params = [{pipeline_mode = #tpu.pipeline_mode<synchronous>, transform_indices = @transform_0, window_bounds = array<i64: 128, 128>}, {pipeline_mode = #tpu.pipeline_mode<synchronous>, transform_indices = @transform_1, window_bounds = array<i64: 128, 128>}, {pipeline_mode = #tpu.pipeline_mode<synchronous>, transform_indices = @transform_2, window_bounds = array<i64: 128, 1>}, {pipeline_mode = #tpu.pipeline_mode<synchronous>, transform_indices = @transform_3, window_bounds = array<i64: 1, 128>}, {pipeline_mode = #tpu.pipeline_mode<synchronous>, transform_indices = @transform_4, window_bounds = array<i64: 128, 128>}, {pipeline_mode = #tpu.pipeline_mode<synchronous>, transform_indices = @transform_5, window_bounds = array<i64: 1, 128>}, {pipeline_mode = #tpu.pipeline_mode<synchronous>, transform_indices = @transform_6, window_bounds = array<i64: 128, 128>}]} {
    %c0 = arith.constant 0 : index
    %c0_0 = arith.constant 0 : index
    %0 = vector.load %arg1[%c0, %c0_0] : memref<128x128xbf16, #tpu.memory_space<vmem>>, vector<128x128xbf16>
    %c0_1 = arith.constant 0 : index
    %c0_2 = arith.constant 0 : index
    %1 = vector.load %arg2[%c0_1, %c0_2] : memref<128x128xbf16, #tpu.memory_space<vmem>>, vector<128x128xbf16>
    %cst = arith.constant dense<0.000000e+00> : vector<128x128xf32>
    %2 = tpu.matmul %0, %1, %cst {dimension_numbers = #tpu.dot_dimension_numbers<[1], [0], [0], [1], [0, 0, 1, 1], [], []>} : vector<128x128xbf16>, vector<128x128xbf16>, vector<128x128xf32> -> vector<128x128xf32>
    %3 = arith.truncf %2 : vector<128x128xf32> to vector<128x128xbf16>
    %c0_3 = arith.constant 0 : index
    %c0_4 = arith.constant 0 : index
    %4 = vector.load %arg3[%c0_3, %c0_4] : memref<128x1xf32, #tpu.memory_space<vmem>>, vector<128x1xf32>
    %c0_5 = arith.constant 0 : index
    %c0_6 = arith.constant 0 : index
    %5 = vector.load %arg4[%c0_5, %c0_6] : memref<1x128xf32, #tpu.memory_space<vmem>>, vector<1x128xf32>
    %c0_7 = arith.constant 0 : index
    %c0_8 = arith.constant 0 : index
    %6 = vector.load %arg5[%c0_7, %c0_8] : memref<128x128xi8, #tpu.memory_space<vmem>>, vector<128x128xi8>
    %c0_9 = arith.constant 0 : index
    %c0_10 = arith.constant 0 : index
    %7 = vector.load %arg6[%c0_9, %c0_10] : memref<1x128xf32, #tpu.memory_space<vmem>>, vector<1x128xf32>
    %8 = arith.sitofp %6 : vector<128x128xi8> to vector<128x128xf32>
    %9 = vector.broadcast %4 : vector<128x1xf32> to vector<128x128xf32>
    %10 = vector.broadcast %5 : vector<1x128xf32> to vector<128x128xf32>
    %11 = arith.addf %9, %10 : vector<128x128xf32>
    %cst_11 = arith.constant 2.000000e-01 : f32
    %12 = vector.broadcast %cst_11 : f32 to vector<128x128xf32>
    %13 = arith.mulf %12, %11 : vector<128x128xf32>
    %14 = arith.maximumf %11, %13 : vector<128x128xf32>
    %cst_12 = arith.constant 0.000000e+00 : f32
    %15 = vector.broadcast %cst_12 : f32 to vector<128x128xf32>
    %16 = arith.cmpf ogt, %8, %15 : vector<128x128xf32>
    %cst_13 = arith.constant -1.000000e+30 : f32
    %17 = vector.broadcast %cst_13 : f32 to vector<128x128xf32>
    %18 = arith.select %16, %14, %17 : vector<128x128xi1>, vector<128x128xf32>
    %cst_14 = arith.constant dense<0xFF800000> : vector<128xf32>
    %19 = vector.multi_reduction <maximumf>, %18, %cst_14 [1] : vector<128x128xf32> to vector<128xf32>
    %20 = vector.shape_cast %19 : vector<128xf32> to vector<128x1xf32>
    %21 = vector.broadcast %20 : vector<128x1xf32> to vector<128x128xf32>
    %22 = arith.subf %18, %21 : vector<128x128xf32>
    %23 = math.exp %22 : vector<128x128xf32>
    %24 = arith.mulf %8, %23 : vector<128x128xf32>
    %cst_15 = arith.constant dense<0.000000e+00> : vector<128xf32>
    %25 = vector.multi_reduction <add>, %24, %cst_15 [1] : vector<128x128xf32> to vector<128xf32>
    %26 = vector.shape_cast %25 : vector<128xf32> to vector<128x1xf32>
    %27 = arith.truncf %24 : vector<128x128xf32> to vector<128x128xbf16>
    %cst_16 = arith.constant dense<0.000000e+00> : vector<128x128xf32>
    %28 = tpu.matmul %27, %3, %cst_16 {dimension_numbers = #tpu.dot_dimension_numbers<[1], [0], [0], [1], [0, 0, 1, 1], [], []>} : vector<128x128xbf16>, vector<128x128xbf16>, vector<128x128xf32> -> vector<128x128xf32>
    %29 = tpu.reciprocal %26 {approx = true} : vector<128x1xf32> -> vector<128x1xf32>
    %30 = vector.broadcast %29 : vector<128x1xf32> to vector<128x128xf32>
    %31 = arith.mulf %28, %30 : vector<128x128xf32>
    %32 = vector.broadcast %7 : vector<1x128xf32> to vector<128x128xf32>
    %33 = arith.addf %31, %32 : vector<128x128xf32>
    %34 = math.tanh %33 : vector<128x128xf32>
    %c0_17 = arith.constant 0 : index
    %c0_18 = arith.constant 0 : index
    %35 = vector.load %arg7[%c0_17, %c0_18] : memref<128x128xf32, #tpu.memory_space<vmem>>, vector<128x128xf32>
    tpu.vector_store %arg7[%c0_17, %c0_18], %34 {strides = array<i32>} : memref<128x128xf32, #tpu.memory_space<vmem>>, vector<128x128xf32>,
    return
  }
  func.func @transform_0(%arg0: i32) -> (i32, i32) {
    %c0_i32 = arith.constant 0 : i32
    %c0_i32_0 = arith.constant 0 : i32
    %c0_i32_1 = arith.constant 0 : i32
    return %c0_i32, %c0_i32_0 : i32, i32
  }
  func.func @transform_1(%arg0: i32) -> (i32, i32) {
    %c0_i32 = arith.constant 0 : i32
    %c0_i32_0 = arith.constant 0 : i32
    %c0_i32_1 = arith.constant 0 : i32
    return %c0_i32, %c0_i32_0 : i32, i32
  }
  func.func @transform_2(%arg0: i32) -> (i32, i32) {
    %c0_i32 = arith.constant 0 : i32
    %c0_i32_0 = arith.constant 0 : i32
    %c0_i32_1 = arith.constant 0 : i32
    return %c0_i32, %c0_i32_0 : i32, i32
  }
  func.func @transform_3(%arg0: i32) -> (i32, i32) {
    %c0_i32 = arith.constant 0 : i32
    %c0_i32_0 = arith.constant 0 : i32
    %c0_i32_1 = arith.constant 0 : i32
    return %c0_i32, %c0_i32_0 : i32, i32
  }
  func.func @transform_4(%arg0: i32) -> (i32, i32) {
    %c0_i32 = arith.constant 0 : i32
    %c0_i32_0 = arith.constant 0 : i32
    %c0_i32_1 = arith.constant 0 : i32
    return %c0_i32, %c0_i32_0 : i32, i32
  }
  func.func @transform_5(%arg0: i32) -> (i32, i32) {
    %c0_i32 = arith.constant 0 : i32
    %c0_i32_0 = arith.constant 0 : i32
    %c0_i32_1 = arith.constant 0 : i32
    return %c0_i32, %c0_i32_0 : i32, i32
  }
  func.func @transform_6(%arg0: i32) -> (i32, i32) {
    %c0_i32 = arith.constant 0 : i32
    %c0_i32_0 = arith.constant 0 : i32
    %c0_i32_1 = arith.constant 0 : i32
    return %c0_i32, %c0_i32_0 : i32, i32
  }
}

module attributes {stable_mosaic.version = 11 : i64} {
  func.func @fused_kernel(%arg0: i32, %arg1: memref<128x128xbf16, #tpu.memory_space<vmem>>, %arg2: memref<128x128xbf16, #tpu.memory_space<vmem>>, %arg3: memref<128x1xf32, #tpu.memory_space<vmem>>, %arg4: memref<1x128xf32, #tpu.memory_space<vmem>>, %arg5: memref<128x128xi8, #tpu.memory_space<vmem>>, %arg6: memref<1x128xf32, #tpu.memory_space<vmem>>, %arg7: memref<128x128xf32, #tpu.memory_space<vmem>>) attributes {dimension_semantics = [#tpu.dimension_semantics<arbitrary>], iteration_bounds = array<i64: 1>, scalar_prefetch = 0 : i64, scratch_operands = 0 : i64, tpu.core_type = #tpu.core_type<tc>, window_params = [{pipeline_mode = #tpu.pipeline_mode<synchronous>, transform_indices = @transform_0, window_bounds = array<i64: 128, 128>}, {pipeline_mode = #tpu.pipeline_mode<synchronous>, transform_indices = @transform_1, window_bounds = array<i64: 128, 128>}, {pipeline_mode = #tpu.pipeline_mode<synchronous>, transform_indices = @transform_2, window_bounds = array<i64: 128, 1>}, {pipeline_mode = #tpu.pipeline_mode<synchronous>, transform_indices = @transform_3, window_bounds = array<i64: 1, 128>}, {pipeline_mode = #tpu.pipeline_mode<synchronous>, transform_indices = @transform_4, window_bounds = array<i64: 128, 128>}, {pipeline_mode = #tpu.pipeline_mode<synchronous>, transform_indices = @transform_5, window_bounds = array<i64: 1, 128>}, {pipeline_mode = #tpu.pipeline_mode<synchronous>, transform_indices = @transform_6, window_bounds = array<i64: 128, 128>}]} {
    %c0 = arith.constant 0 : index
    %c0_0 = arith.constant 0 : index
    %0 = vector.load %arg1[%c0, %c0_0] : memref<128x128xbf16, #tpu.memory_space<vmem>>, vector<128x128xbf16>
    %c0_1 = arith.constant 0 : index
    %c0_2 = arith.constant 0 : index
    %1 = vector.load %arg2[%c0_1, %c0_2] : memref<128x128xbf16, #tpu.memory_space<vmem>>, vector<128x128xbf16>
    %cst = arith.constant dense<0.000000e+00> : vector<128x128xf32>
    %2 = tpu.matmul %0, %1, %cst {dimension_numbers = #tpu.dot_dimension_numbers<[1], [0], [0], [1], [0, 0, 1, 1], [], []>} : vector<128x128xbf16>, vector<128x128xbf16>, vector<128x128xf32> -> vector<128x128xf32>
    %3 = arith.truncf %2 : vector<128x128xf32> to vector<128x128xbf16>
    %c0_3 = arith.constant 0 : index
    %c0_4 = arith.constant 0 : index
    %4 = vector.load %arg3[%c0_3, %c0_4] : memref<128x1xf32, #tpu.memory_space<vmem>>, vector<128x1xf32>
    %c0_5 = arith.constant 0 : index
    %c0_6 = arith.constant 0 : index
    %5 = vector.load %arg4[%c0_5, %c0_6] : memref<1x128xf32, #tpu.memory_space<vmem>>, vector<1x128xf32>
    %c0_7 = arith.constant 0 : index
    %c0_8 = arith.constant 0 : index
    %6 = vector.load %arg5[%c0_7, %c0_8] : memref<128x128xi8, #tpu.memory_space<vmem>>, vector<128x128xi8>
    %c0_9 = arith.constant 0 : index
    %c0_10 = arith.constant 0 : index
    %7 = vector.load %arg6[%c0_9, %c0_10] : memref<1x128xf32, #tpu.memory_space<vmem>>, vector<1x128xf32>
    %8 = arith.sitofp %6 : vector<128x128xi8> to vector<128x128xf32>
    %9 = vector.broadcast %4 : vector<128x1xf32> to vector<128x128xf32>
    %10 = vector.broadcast %5 : vector<1x128xf32> to vector<128x128xf32>
    %11 = arith.addf %9, %10 : vector<128x128xf32>
    %cst_11 = arith.constant 2.000000e-01 : f32
    %12 = vector.broadcast %cst_11 : f32 to vector<128x128xf32>
    %13 = arith.mulf %12, %11 : vector<128x128xf32>
    %14 = arith.maximumf %11, %13 : vector<128x128xf32>
    %cst_12 = arith.constant 0.000000e+00 : f32
    %15 = vector.broadcast %cst_12 : f32 to vector<128x128xf32>
    %16 = arith.cmpf ogt, %8, %15 : vector<128x128xf32>
    %cst_13 = arith.constant -1.000000e+30 : f32
    %17 = vector.broadcast %cst_13 : f32 to vector<128x128xf32>
    %18 = arith.select %16, %14, %17 : vector<128x128xi1>, vector<128x128xf32>
    %cst_14 = arith.constant dense<0xFF800000> : vector<128xf32>
    %19 = vector.multi_reduction <maximumf>, %18, %cst_14 [1] : vector<128x128xf32> to vector<128xf32>
    %20 = vector.shape_cast %19 : vector<128xf32> to vector<128x1xf32>
    %21 = vector.broadcast %20 : vector<128x1xf32> to vector<128x128xf32>
    %22 = arith.subf %18, %21 : vector<128x128xf32>
    %23 = math.exp %22 : vector<128x128xf32>
    %24 = arith.mulf %8, %23 : vector<128x128xf32>
    %cst_15 = arith.constant dense<0.000000e+00> : vector<128xf32>
    %25 = vector.multi_reduction <add>, %24, %cst_15 [1] : vector<128x128xf32> to vector<128xf32>
    %26 = vector.shape_cast %25 : vector<128xf32> to vector<128x1xf32>
    %27 = arith.truncf %24 : vector<128x128xf32> to vector<128x128xbf16>
    %cst_16 = arith.constant dense<0.000000e+00> : vector<128x128xf32>
    %28 = tpu.matmul %27, %3, %cst_16 {dimension_numbers = #tpu.dot_dimension_numbers<[1], [0], [0], [1], [0, 0, 1, 1], [], []>} : vector<128x128xbf16>, vector<128x128xbf16>, vector<128x128xf32> -> vector<128x128xf32>
    %29 = tpu.reciprocal %26 {approx = true} : vector<128x1xf32> -> vector<128x1xf32>
    %30 = vector.broadcast %29 : vector<128x1xf32> to vector<128x128xf32>
    %31 = arith.mulf %28, %30 : vector<128x128xf32>
    %32 = vector.broadcast %7 : vector<1x128xf32> to vector<128x128xf32>
    %33 = arith.addf %31, %32 : vector<128x128xf32>
    %34 = math.tanh %33 : vector<128x128xf32>
    %c0_17 = arith.constant 0 : index
    %c0_18 = arith.constant 0 : index
    %35 = vector.load %arg7[%c0_17, %c0_18] : memref<128x128xf32, #tpu.memory_space<vmem>>, vector<128x128xf32>
    tpu.vector_store %arg7[%c0_17, %c0_18], %34 {strides = array<i32>} : memref<128x128xf32, #tpu.memory_space<vmem>>, vector<128x128xf32>,
    return
  }
  func.func @transform_0(%arg0: i32) -> (i32, i32) {
    %c0_i32 = arith.constant 0 : i32
    %c0_i32_0 = arith.constant 0 : i32
    %c0_i32_1 = arith.constant 0 : i32
    return %c0_i32, %c0_i32_0 : i32, i32
  }
  func.func @transform_1(%arg0: i32) -> (i32, i32) {
    %c0_i32 = arith.constant 0 : i32
    %c0_i32_0 = arith.constant 0 : i32
    %c0_i32_1 = arith.constant 0 : i32
    return %c0_i32, %c0_i32_0 : i32, i32
  }
  func.func @transform_2(%arg0: i32) -> (i32, i32) {
    %c0_i32 = arith.constant 0 : i32
    %c0_i32_0 = arith.constant 0 : i32
    %c0_i32_1 = arith.constant 0 : i32
    return %c0_i32, %c0_i32_0 : i32, i32
  }
  func.func @transform_3(%arg0: i32) -> (i32, i32) {
    %c0_i32 = arith.constant 0 : i32
    %c0_i32_0 = arith.constant 0 : i32
    %c0_i32_1 = arith.constant 0 : i32
    return %c0_i32, %c0_i32_0 : i32, i32
  }
  func.func @transform_4(%arg0: i32) -> (i32, i32) {
    %c0_i32 = arith.constant 0 : i32
    %c0_i32_0 = arith.constant 0 : i32
    %c0_i32_1 = arith.constant 0 : i32
    return %c0_i32, %c0_i32_0 : i32, i32
  }
  func.func @transform_5(%arg0: i32) -> (i32, i32) {
    %c0_i32 = arith.constant 0 : i32
    %c0_i32_0 = arith.constant 0 : i32
    %c0_i32_1 = arith.constant 0 : i32
    return %c0_i32, %c0_i32_0 : i32, i32
  }
  func.func @transform_6(%arg0: i32) -> (i32, i32) {
    %c0_i32 = arith.constant 0 : i32
    %c0_i32_0 = arith.constant 0 : i32
    %c0_i32_1 = arith.constant 0 : i32
    return %c0_i32, %c0_i32_0 : i32, i32
  }
}

</mosaic_0001>

<llo_original>
// kernel: _breadth_forward.1
$region0: #{_breadth_forward.1}
  #allocation0 [shape = 'u32[]', space=smem, size = 0x4, offset = 0x4, fixed_abs, tag = 'smem constant byte address 0x4 - core index']
  #allocation1 [shape = 'u32[72,128]{1,0:T(1,128)}', space=vmem, size = 0x9000, scoped, tag = 'internal scratch']
  %s0 = inlined_call_operand.vmem [shape: bf16[128,128], index: 0, kind: input, shape index: {}]
  %s1 = inlined_call_operand.vmem [shape: bf16[128,128], index: 1, kind: input, shape index: {}]
  %s2 = inlined_call_operand.vmem [shape: f32[128,1], index: 2, kind: input, shape index: {}]
  %s3 = inlined_call_operand.vmem [shape: f32[1,128], index: 3, kind: input, shape index: {}]
  %s4 = inlined_call_operand.vmem [shape: s8[128,128], index: 4, kind: input, shape index: {}]
  %s5 = inlined_call_operand.vmem [shape: f32[1,128], index: 5, kind: input, shape index: {}]
  %s6 = inlined_call_operand.vmem [shape: f32[128,128], index: 6, kind: output, shape index: {}]
  %s7 = sld [smem:[#allocation0]]
  $region34: #{_breadth_forward.1} parent=0
    _
  %s9 = ssub.s32 1, %s7
  %s10 = scalar_select 0, %s9, %s7
  // Predicated region
  $region2: #{_breadth_forward.1} parent=0 // pred_check
    _
  $region3: #{_breadth_forward.1} parent=0 // pred_check_branch
    %12 = sbr.rel (0) target = $region5
  $region4: #{_breadth_forward.1} parent=0 // pred_region
    _
  $region5: #{_breadth_forward.1} parent=0 // pred_fallthru
    _
  // Predicated region
  $region6: #{_breadth_forward.1} parent=0 // pred_check
    _
  $region7: #{_breadth_forward.1} parent=0 // pred_check_branch
    %14 = sbr.rel (0) target = $region9
  $region8: #{_breadth_forward.1} parent=0 // pred_region
    _
  $region9: #{_breadth_forward.1} parent=0 // pred_fallthru
    _
  // Predicated region
  $region10: #{_breadth_forward.1} parent=0 // pred_check
    _
  $region11: #{_breadth_forward.1} parent=0 // pred_check_branch
    %16 = sbr.rel (0) target = $region13
  $region12: #{_breadth_forward.1} parent=0 // pred_region
    _
  $region13: #{_breadth_forward.1} parent=0 // pred_fallthru
    _
  // Predicated region
  $region14: #{_breadth_forward.1} parent=0 // pred_check
    _
  $region15: #{_breadth_forward.1} parent=0 // pred_check_branch
    %18 = sbr.rel (0) target = $region17
  $region16: #{_breadth_forward.1} parent=0 // pred_region
    _
  $region17: #{_breadth_forward.1} parent=0 // pred_fallthru
    _
  // Predicated region
  $region18: #{_breadth_forward.1} parent=0 // pred_check
    _
  $region19: #{_breadth_forward.1} parent=0 // pred_check_branch
    %20 = sbr.rel (0) target = $region21
  $region20: #{_breadth_forward.1} parent=0 // pred_region
    _
  $region21: #{_breadth_forward.1} parent=0 // pred_fallthru
    _
  // Predicated region
  $region22: #{_breadth_forward.1} parent=0 // pred_check
    _
  $region23: #{_breadth_forward.1} parent=0 // pred_check_branch
    %22 = sbr.rel (0) target = $region25
  $region24: #{_breadth_forward.1} parent=0 // pred_region
    _
  $region25: #{_breadth_forward.1} parent=0 // pred_fallthru
    _
  %v23 = vld [vmem:[%s0] sm:$0xf]
  %v24 = vld [vmem:[%s0 + $0x4] sm:$0xf]
  %v25 = vld [vmem:[%s0 + $0x8] sm:$0xf]
  %v26 = vld [vmem:[%s0 + $0xc] sm:$0xf]
  %v27 = vld [vmem:[%s0 + $0x10] sm:$0xf]
  %v28 = vld [vmem:[%s0 + $0x14] sm:$0xf]
  %v29 = vld [vmem:[%s0 + $0x18] sm:$0xf]
  %v30 = vld [vmem:[%s0 + $0x1c] sm:$0xf]
  %v31 = vld [vmem:[%s0 + $0x20] sm:$0xf]
  %v32 = vld [vmem:[%s0 + $0x24] sm:$0xf]
  %v33 = vld [vmem:[%s0 + $0x28] sm:$0xf]
  %v34 = vld [vmem:[%s0 + $0x2c] sm:$0xf]
  %v35 = vld [vmem:[%s0 + $0x30] sm:$0xf]
  %v36 = vld [vmem:[%s0 + $0x34] sm:$0xf]
  %v37 = vld [vmem:[%s0 + $0x38] sm:$0xf]
  %v38 = vld [vmem:[%s0 + $0x3c] sm:$0xf]
  %v39 = vld [vmem:[%s1] sm:$0xf]
  %v40 = vld [vmem:[%s1 + $0x4] sm:$0xf]
  %v41 = vld [vmem:[%s1 + $0x8] sm:$0xf]
  %v42 = vld [vmem:[%s1 + $0xc] sm:$0xf]
  %v43 = vld [vmem:[%s1 + $0x10] sm:$0xf]
  %v44 = vld [vmem:[%s1 + $0x14] sm:$0xf]
  %v45 = vld [vmem:[%s1 + $0x18] sm:$0xf]
  %v46 = vld [vmem:[%s1 + $0x1c] sm:$0xf]
  %v47 = vld [vmem:[%s1 + $0x20] sm:$0xf]
  %v48 = vld [vmem:[%s1 + $0x24] sm:$0xf]
  %v49 = vld [vmem:[%s1 + $0x28] sm:$0xf]
  %v50 = vld [vmem:[%s1 + $0x2c] sm:$0xf]
  %v51 = vld [vmem:[%s1 + $0x30] sm:$0xf]
  %v52 = vld [vmem:[%s1 + $0x34] sm:$0xf]
  %v53 = vld [vmem:[%s1 + $0x38] sm:$0xf]
  %v54 = vld [vmem:[%s1 + $0x3c] sm:$0xf]
  %v71 = vunpack.c.l.b16 %v23
  %v72 = vunpack.c.l.b16 %v24
  %v73 = vunpack.c.l.b16 %v25
  %v74 = vunpack.c.l.b16 %v26
  %v75 = vunpack.c.l.b16 %v27
  %v76 = vunpack.c.l.b16 %v28
  %v77 = vunpack.c.l.b16 %v29
  %v78 = vunpack.c.l.b16 %v30
  %v79 = vunpack.c.l.b16 %v31
  %v80 = vunpack.c.l.b16 %v32
  %v81 = vunpack.c.l.b16 %v33
  %v82 = vunpack.c.l.b16 %v34
  %v83 = vunpack.c.l.b16 %v35
  %v84 = vunpack.c.l.b16 %v36
  %v85 = vunpack.c.l.b16 %v37
  %v86 = vunpack.c.l.b16 %v38
  %v87 = vpack.c.b16 %v72, %v71
  %v88 = vpack.c.b16 %v74, %v73
  %v89 = vpack.c.b16 %v76, %v75
  %v90 = vpack.c.b16 %v78, %v77
  %v91 = vpack.c.b16 %v80, %v79
  %v92 = vpack.c.b16 %v82, %v81
  %v93 = vpack.c.b16 %v84, %v83
  %v94 = vpack.c.b16 %v86, %v85
  %v119 = vunpack.c.l.b16 %v39
  %v120 = vunpack.c.l.b16 %v40
  %v121 = vunpack.c.l.b16 %v41
  %v122 = vunpack.c.l.b16 %v42
  %v123 = vunpack.c.l.b16 %v43
  %v124 = vunpack.c.l.b16 %v44
  %v125 = vunpack.c.l.b16 %v45
  %v126 = vunpack.c.l.b16 %v46
  %v127 = vunpack.c.l.b16 %v47
  %v128 = vunpack.c.l.b16 %v48
  %v129 = vunpack.c.l.b16 %v49
  %v130 = vunpack.c.l.b16 %v50
  %v131 = vunpack.c.l.b16 %v51
  %v132 = vunpack.c.l.b16 %v52
  %v133 = vunpack.c.l.b16 %v53
  %v134 = vunpack.c.l.b16 %v54
  %v135 = vpack.c.b16 %v120, %v119
  %v136 = vpack.c.b16 %v122, %v121
  %v137 = vpack.c.b16 %v124, %v123
  %v138 = vpack.c.b16 %v126, %v125
  %v139 = vpack.c.b16 %v128, %v127
  %v140 = vpack.c.b16 %v130, %v129
  %v141 = vpack.c.b16 %v132, %v131
  %v142 = vpack.c.b16 %v134, %v133
  %151 = vmatpush.bf16.msra.mxu0 %v142
  %152 = vmatpush.bf16.msra.mxu0 %v141
  %153 = vmatpush.bf16.msra.mxu0 %v140
  %154 = vmatpush.bf16.msra.mxu0 %v139
  %155 = vmatpush.bf16.msra.mxu0 %v138
  %156 = vmatpush.bf16.msra.mxu0 %v137
  %157 = vmatpush.bf16.msra.mxu0 %v136
  %158 = vmatpush.bf16.msra.mxu0 %v135
  %159 = vmatmul.bf16.gmra.mxu0 %v87
  %v160 = vpop.f32.mrf.mxu0
  %v161 = vadd.f32 0.0, %v160
  %v162 = vpop.f32.mrf.mxu0
  %v163 = vadd.f32 0.0, %v162
  %164 = vmatmul.bf16.gmra.mxu0 %v88
  %v165 = vpop.f32.mrf.mxu0
  %v166 = vadd.f32 0.0, %v165
  %v167 = vpop.f32.mrf.mxu0
  %v168 = vadd.f32 0.0, %v167
  %169 = vmatmul.bf16.gmra.mxu0 %v89
  %v170 = vpop.f32.mrf.mxu0
  %v171 = vadd.f32 0.0, %v170
  %v172 = vpop.f32.mrf.mxu0
  %v173 = vadd.f32 0.0, %v172
  %174 = vmatmul.bf16.gmra.mxu0 %v90
  %v175 = vpop.f32.mrf.mxu0
  %v176 = vadd.f32 0.0, %v175
  %v177 = vpop.f32.mrf.mxu0
  %v178 = vadd.f32 0.0, %v177
  %179 = vmatmul.bf16.gmra.mxu0 %v91
  %v180 = vpop.f32.mrf.mxu0
  %v181 = vadd.f32 0.0, %v180
  %v182 = vpop.f32.mrf.mxu0
  %v183 = vadd.f32 0.0, %v182
  %184 = vmatmul.bf16.gmra.mxu0 %v92
  %v185 = vpop.f32.mrf.mxu0
  %v186 = vadd.f32 0.0, %v185
  %v187 = vpop.f32.mrf.mxu0
  %v188 = vadd.f32 0.0, %v187
  %189 = vmatmul.bf16.gmra.mxu0 %v93
  %v190 = vpop.f32.mrf.mxu0
  %v191 = vadd.f32 0.0, %v190
  %v192 = vpop.f32.mrf.mxu0
  %v193 = vadd.f32 0.0, %v192
  %194 = vmatmul.bf16.gmra.mxu0 %v94
  %v195 = vpop.f32.mrf.mxu0
  %v196 = vadd.f32 0.0, %v195
  %v197 = vpop.f32.mrf.mxu0
  %v198 = vadd.f32 0.0, %v197
  %199 = vdwg.mxu0
  %v200 = vpack.c.bf16 %v163, %v161
  %v201 = vpack.c.bf16 %v168, %v166
  %v202 = vpack.c.bf16 %v173, %v171
  %v203 = vpack.c.bf16 %v178, %v176
  %v204 = vpack.c.bf16 %v183, %v181
  %v205 = vpack.c.bf16 %v188, %v186
  %v206 = vpack.c.bf16 %v193, %v191
  %v207 = vpack.c.bf16 %v198, %v196
  %v208 = vld [vmem:[%s2] sm:$0xff]
  %v209 = vld [vmem:[%s2 + $0x8] sm:$0xff]
  %v210 = vld [vmem:[%s2 + $0x10] sm:$0xff]
  %v211 = vld [vmem:[%s2 + $0x18] sm:$0xff]
  %v212 = vld [vmem:[%s2 + $0x20] sm:$0xff]
  %v213 = vld [vmem:[%s2 + $0x28] sm:$0xff]
  %v214 = vld [vmem:[%s2 + $0x30] sm:$0xff]
  %v215 = vld [vmem:[%s2 + $0x38] sm:$0xff]
  %v216 = vld [vmem:[%s2 + $0x40] sm:$0xff]
  %v217 = vld [vmem:[%s2 + $0x48] sm:$0xff]
  %v218 = vld [vmem:[%s2 + $0x50] sm:$0xff]
  %v219 = vld [vmem:[%s2 + $0x58] sm:$0xff]
  %v220 = vld [vmem:[%s2 + $0x60] sm:$0xff]
  %v221 = vld [vmem:[%s2 + $0x68] sm:$0xff]
  %v222 = vld [vmem:[%s2 + $0x70] sm:$0xff]
  %v223 = vld [vmem:[%s2 + $0x78] sm:$0xff]
  %v224 = vld [vmem:[%s3] sm:$0x1]
  %v225 = vld [vmem:[%s4] sm:$0xff]
  %v226 = vld [vmem:[%s4 + $0x8] sm:$0xff]
  %v227 = vld [vmem:[%s4 + $0x10] sm:$0xff]
  %v228 = vld [vmem:[%s4 + $0x18] sm:$0xff]
  %v229 = vld [vmem:[%s5] sm:$0x1]
  %v230 = vunpack.c.0.s8 %v225
  %v231 = vunpack.c.1.s8 %v225
  %v232 = vunpack.c.2.s8 %v225
  %v233 = vunpack.c.3.s8 %v225
  %v234 = vunpack.c.0.s8 %v226
  %v235 = vunpack.c.1.s8 %v226
  %v236 = vunpack.c.2.s8 %v226
  %v237 = vunpack.c.3.s8 %v226
  %v238 = vunpack.c.0.s8 %v227
  %v239 = vunpack.c.1.s8 %v227
  %v240 = vunpack.c.2.s8 %v227
  %v241 = vunpack.c.3.s8 %v227
  %v242 = vunpack.c.0.s8 %v228
  %v243 = vunpack.c.1.s8 %v228
  %v244 = vunpack.c.2.s8 %v228
  %v245 = vunpack.c.3.s8 %v228
  %v246 = vcvt.s32.f32 %v230
  %v247 = vcvt.s32.f32 %v231
  %v248 = vcvt.s32.f32 %v232
  %v249 = vcvt.s32.f32 %v233
  %v250 = vcvt.s32.f32 %v234
  %v251 = vcvt.s32.f32 %v235
  %v252 = vcvt.s32.f32 %v236
  %v253 = vcvt.s32.f32 %v237
  %v254 = vcvt.s32.f32 %v238
  %v255 = vcvt.s32.f32 %v239
  %v256 = vcvt.s32.f32 %v240
  %v257 = vcvt.s32.f32 %v241
  %v258 = vcvt.s32.f32 %v242
  %v259 = vcvt.s32.f32 %v243
  %v260 = vcvt.s32.f32 %v244
  %v261 = vcvt.s32.f32 %v245
  %263 = vset.pattern.permute.xlu0 0
  %264 = vperm.xlu0 %263, %v208
  %v265 = vpop.permute.xlu0 %264
  %268 = vset.pattern.permute.xlu0 0
  %269 = vperm.xlu0 %268, %v209
  %v270 = vpop.permute.xlu0 %269
  %273 = vset.pattern.permute.xlu0 0
  %274 = vperm.xlu0 %273, %v210
  %v275 = vpop.permute.xlu0 %274
  %278 = vset.pattern.permute.xlu0 0
  %279 = vperm.xlu0 %278, %v211
  %v280 = vpop.permute.xlu0 %279
  %283 = vset.pattern.permute.xlu0 0
  %284 = vperm.xlu0 %283, %v212
  %v285 = vpop.permute.xlu0 %284
  %288 = vset.pattern.permute.xlu0 0
  %289 = vperm.xlu0 %288, %v213
  %v290 = vpop.permute.xlu0 %289
  %293 = vset.pattern.permute.xlu0 0
  %294 = vperm.xlu0 %293, %v214
  %v295 = vpop.permute.xlu0 %294
  %298 = vset.pattern.permute.xlu0 0
  %299 = vperm.xlu0 %298, %v215
  %v300 = vpop.permute.xlu0 %299
  %303 = vset.pattern.permute.xlu0 0
  %304 = vperm.xlu0 %303, %v216
  %v305 = vpop.permute.xlu0 %304
  %308 = vset.pattern.permute.xlu0 0
  %309 = vperm.xlu0 %308, %v217
  %v310 = vpop.permute.xlu0 %309
  %313 = vset.pattern.permute.xlu0 0
  %314 = vperm.xlu0 %313, %v218
  %v315 = vpop.permute.xlu0 %314
  %318 = vset.pattern.permute.xlu0 0
  %319 = vperm.xlu0 %318, %v219
  %v320 = vpop.permute.xlu0 %319
  %323 = vset.pattern.permute.xlu0 0
  %324 = vperm.xlu0 %323, %v220
  %v325 = vpop.permute.xlu0 %324
  %328 = vset.pattern.permute.xlu0 0
  %329 = vperm.xlu0 %328, %v221
  %v330 = vpop.permute.xlu0 %329
  %333 = vset.pattern.permute.xlu0 0
  %334 = vperm.xlu0 %333, %v222
  %v335 = vpop.permute.xlu0 %334
  %338 = vset.pattern.permute.xlu0 0
  %339 = vperm.xlu0 %338, %v223
  %v340 = vpop.permute.xlu0 %339
  %v343 = vperm.slane %v224, 0
  %v345 = vadd.f32 %v265, %v343
  %v346 = vadd.f32 %v270, %v343
  %v347 = vadd.f32 %v275, %v343
  %v348 = vadd.f32 %v280, %v343
  %v349 = vadd.f32 %v285, %v343
  %v350 = vadd.f32 %v290, %v343
  %v351 = vadd.f32 %v295, %v343
  %v352 = vadd.f32 %v300, %v343
  %v353 = vadd.f32 %v305, %v343
  %v354 = vadd.f32 %v310, %v343
  %v355 = vadd.f32 %v315, %v343
  %v356 = vadd.f32 %v320, %v343
  %v357 = vadd.f32 %v325, %v343
  %v358 = vadd.f32 %v330, %v343
  %v359 = vadd.f32 %v335, %v343
  %v360 = vadd.f32 %v340, %v343
  %v361 = vmul.f32 %v345, 0.2
  %v362 = vmul.f32 %v346, 0.2
  %v363 = vmul.f32 %v347, 0.2
  %v364 = vmul.f32 %v348, 0.2
  %v365 = vmul.f32 %v349, 0.2
  %v366 = vmul.f32 %v350, 0.2
  %v367 = vmul.f32 %v351, 0.2
  %v368 = vmul.f32 %v352, 0.2
  %v369 = vmul.f32 %v353, 0.2
  %v370 = vmul.f32 %v354, 0.2
  %v371 = vmul.f32 %v355, 0.2
  %v372 = vmul.f32 %v356, 0.2
  %v373 = vmul.f32 %v357, 0.2
  %v374 = vmul.f32 %v358, 0.2
  %v375 = vmul.f32 %v359, 0.2
  %v376 = vmul.f32 %v360, 0.2
  %v377 = vmax.f32 %v345, %v361
  %v378 = vmax.f32 %v346, %v362
  %v379 = vmax.f32 %v347, %v363
  %v380 = vmax.f32 %v348, %v364
  %v381 = vmax.f32 %v349, %v365
  %v382 = vmax.f32 %v350, %v366
  %v383 = vmax.f32 %v351, %v367
  %v384 = vmax.f32 %v352, %v368
  %v385 = vmax.f32 %v353, %v369
  %v386 = vmax.f32 %v354, %v370
  %v387 = vmax.f32 %v355, %v371
  %v388 = vmax.f32 %v356, %v372
  %v389 = vmax.f32 %v357, %v373
  %v390 = vmax.f32 %v358, %v374
  %v391 = vmax.f32 %v359, %v375
  %v392 = vmax.f32 %v360, %v376
  %vm393 = vcmp.gt.f32.partialorder %v246, 0.0
  %vm394 = vcmp.gt.f32.partialorder %v247, 0.0
  %vm395 = vcmp.gt.f32.partialorder %v248, 0.0
  %vm396 = vcmp.gt.f32.partialorder %v249, 0.0
  %vm397 = vcmp.gt.f32.partialorder %v250, 0.0
  %vm398 = vcmp.gt.f32.partialorder %v251, 0.0
  %vm399 = vcmp.gt.f32.partialorder %v252, 0.0
  %vm400 = vcmp.gt.f32.partialorder %v253, 0.0
  %vm401 = vcmp.gt.f32.partialorder %v254, 0.0
  %vm402 = vcmp.gt.f32.partialorder %v255, 0.0
  %vm403 = vcmp.gt.f32.partialorder %v256, 0.0
  %vm404 = vcmp.gt.f32.partialorder %v257, 0.0
  %vm405 = vcmp.gt.f32.partialorder %v258, 0.0
  %vm406 = vcmp.gt.f32.partialorder %v259, 0.0
  %vm407 = vcmp.gt.f32.partialorder %v260, 0.0
  %vm408 = vcmp.gt.f32.partialorder %v261, 0.0
  %v409 = vsel %vm393, %v377, -1e+30
  %v410 = vsel %vm394, %v378, -1e+30
  %v411 = vsel %vm395, %v379, -1e+30
  %v412 = vsel %vm396, %v380, -1e+30
  %v413 = vsel %vm397, %v381, -1e+30
  %v414 = vsel %vm398, %v382, -1e+30
  %v415 = vsel %vm399, %v383, -1e+30
  %v416 = vsel %vm400, %v384, -1e+30
  %v417 = vsel %vm401, %v385, -1e+30
  %v418 = vsel %vm402, %v386, -1e+30
  %v419 = vsel %vm403, %v387, -1e+30
  %v420 = vsel %vm404, %v388, -1e+30
  %v421 = vsel %vm405, %v389, -1e+30
  %v422 = vsel %vm406, %v390, -1e+30
  %v423 = vsel %vm407, %v391, -1e+30
  %v424 = vsel %vm408, %v392, -1e+30
  %425 = vmax.xlane.f32.xlu0 %v409
  %v426 = vpop.xlane.xlu0 %425
  %427 = vmax.xlane.f32.xlu0 %v410
  %v428 = vpop.xlane.xlu0 %427
  %429 = vmax.xlane.f32.xlu0 %v411
  %v430 = vpop.xlane.xlu0 %429
  %431 = vmax.xlane.f32.xlu0 %v412
  %v432 = vpop.xlane.xlu0 %431
  %433 = vmax.xlane.f32.xlu0 %v413
  %v434 = vpop.xlane.xlu0 %433
  %435 = vmax.xlane.f32.xlu0 %v414
  %v436 = vpop.xlane.xlu0 %435
  %437 = vmax.xlane.f32.xlu0 %v415
  %v438 = vpop.xlane.xlu0 %437
  %439 = vmax.xlane.f32.xlu0 %v416
  %v440 = vpop.xlane.xlu0 %439
  %441 = vmax.xlane.f32.xlu0 %v417
  %v442 = vpop.xlane.xlu0 %441
  %443 = vmax.xlane.f32.xlu0 %v418
  %v444 = vpop.xlane.xlu0 %443
  %445 = vmax.xlane.f32.xlu0 %v419
  %v446 = vpop.xlane.xlu0 %445
  %447 = vmax.xlane.f32.xlu0 %v420
  %v448 = vpop.xlane.xlu0 %447
  %449 = vmax.xlane.f32.xlu0 %v421
  %v450 = vpop.xlane.xlu0 %449
  %451 = vmax.xlane.f32.xlu0 %v422
  %v452 = vpop.xlane.xlu0 %451
  %453 = vmax.xlane.f32.xlu0 %v423
  %v454 = vpop.xlane.xlu0 %453
  %455 = vmax.xlane.f32.xlu0 %v424
  %v456 = vpop.xlane.xlu0 %455
  %v457 = vsub.f32 %v409, %v426
  %v458 = vsub.f32 %v410, %v428
  %v459 = vsub.f32 %v411, %v430
  %v460 = vsub.f32 %v412, %v432
  %v461 = vsub.f32 %v413, %v434
  %v462 = vsub.f32 %v414, %v436
  %v463 = vsub.f32 %v415, %v438
  %v464 = vsub.f32 %v416, %v440
  %v465 = vsub.f32 %v417, %v442
  %v466 = vsub.f32 %v418, %v444
  %v467 = vsub.f32 %v419, %v446
  %v468 = vsub.f32 %v420, %v448
  %v469 = vsub.f32 %v421, %v450
  %v470 = vsub.f32 %v422, %v452
  %v471 = vsub.f32 %v423, %v454
  %v472 = vsub.f32 %v424, %v456
  %v473 = vmul.f32 %v457, 1.442695
  %v474 = vpow.pop %v473
  %v475 = vmul.f32 %v458, 1.442695
  %v476 = vpow.pop %v475
  %v477 = vmul.f32 %v459, 1.442695
  %v478 = vpow.pop %v477
  %v479 = vmul.f32 %v460, 1.442695
  %v480 = vpow.pop %v479
  %v481 = vmul.f32 %v461, 1.442695
  %v482 = vpow.pop %v481
  %v483 = vmul.f32 %v462, 1.442695
  %v484 = vpow.pop %v483
  %v485 = vmul.f32 %v463, 1.442695
  %v486 = vpow.pop %v485
  %v487 = vmul.f32 %v464, 1.442695
  %v488 = vpow.pop %v487
  %v489 = vmul.f32 %v465, 1.442695
  %v490 = vpow.pop %v489
  %v491 = vmul.f32 %v466, 1.442695
  %v492 = vpow.pop %v491
  %v493 = vmul.f32 %v467, 1.442695
  %v494 = vpow.pop %v493
  %v495 = vmul.f32 %v468, 1.442695
  %v496 = vpow.pop %v495
  %v497 = vmul.f32 %v469, 1.442695
  %v498 = vpow.pop %v497
  %v499 = vmul.f32 %v470, 1.442695
  %v500 = vpow.pop %v499
  %v501 = vmul.f32 %v471, 1.442695
  %v502 = vpow.pop %v501
  %v503 = vmul.f32 %v472, 1.442695
  %v504 = vpow.pop %v503
  %v505 = vmul.f32 %v246, %v474
  %v506 = vmul.f32 %v247, %v476
  %v507 = vmul.f32 %v248, %v478
  %v508 = vmul.f32 %v249, %v480
  %v509 = vmul.f32 %v250, %v482
  %v510 = vmul.f32 %v251, %v484
  %v511 = vmul.f32 %v252, %v486
  %v512 = vmul.f32 %v253, %v488
  %v513 = vmul.f32 %v254, %v490
  %v514 = vmul.f32 %v255, %v492
  %v515 = vmul.f32 %v256, %v494
  %v516 = vmul.f32 %v257, %v496
  %v517 = vmul.f32 %v258, %v498
  %v518 = vmul.f32 %v259, %v500
  %v519 = vmul.f32 %v260, %v502
  %v520 = vmul.f32 %v261, %v504
  %521 = vadd.xlane.f32.xlu0 %v505
  %v522 = vpop.xlane.xlu0 %521
  %523 = vadd.xlane.f32.xlu0 %v506
  %v524 = vpop.xlane.xlu0 %523
  %525 = vadd.xlane.f32.xlu0 %v507
  %v526 = vpop.xlane.xlu0 %525
  %527 = vadd.xlane.f32.xlu0 %v508
  %v528 = vpop.xlane.xlu0 %527
  %529 = vadd.xlane.f32.xlu0 %v509
  %v530 = vpop.xlane.xlu0 %529
  %531 = vadd.xlane.f32.xlu0 %v510
  %v532 = vpop.xlane.xlu0 %531
  %533 = vadd.xlane.f32.xlu0 %v511
  %v534 = vpop.xlane.xlu0 %533
  %535 = vadd.xlane.f32.xlu0 %v512
  %v536 = vpop.xlane.xlu0 %535
  %537 = vadd.xlane.f32.xlu0 %v513
  %v538 = vpop.xlane.xlu0 %537
  %539 = vadd.xlane.f32.xlu0 %v514
  %v540 = vpop.xlane.xlu0 %539
  %541 = vadd.xlane.f32.xlu0 %v515
  %v542 = vpop.xlane.xlu0 %541
  %543 = vadd.xlane.f32.xlu0 %v516
  %v544 = vpop.xlane.xlu0 %543
  %545 = vadd.xlane.f32.xlu0 %v517
  %v546 = vpop.xlane.xlu0 %545
  %547 = vadd.xlane.f32.xlu0 %v518
  %v548 = vpop.xlane.xlu0 %547
  %549 = vadd.xlane.f32.xlu0 %v519
  %v550 = vpop.xlane.xlu0 %549
  %551 = vadd.xlane.f32.xlu0 %v520
  %v552 = vpop.xlane.xlu0 %551
  %v553 = vpack.c.bf16 %v506, %v505
  %v554 = vpack.c.bf16 %v508, %v507
  %v555 = vpack.c.bf16 %v510, %v509
  %v556 = vpack.c.bf16 %v512, %v511
  %v557 = vpack.c.bf16 %v514, %v513
  %v558 = vpack.c.bf16 %v516, %v515
  %v559 = vpack.c.bf16 %v518, %v517
  %v560 = vpack.c.bf16 %v520, %v519
  %561 = vmatpush.bf16.msra.mxu0 %v207
  %562 = vmatpush.bf16.msra.mxu0 %v206
  %563 = vmatpush.bf16.msra.mxu0 %v205
  %564 = vmatpush.bf16.msra.mxu0 %v204
  %565 = vmatpush.bf16.msra.mxu0 %v203
  %566 = vmatpush.bf16.msra.mxu0 %v202
  %567 = vmatpush.bf16.msra.mxu0 %v201
  %568 = vmatpush.bf16.msra.mxu0 %v200
  %569 = vmatmul.bf16.gmra.mxu0 %v553
  %v570 = vpop.f32.mrf.mxu0
  %v571 = vadd.f32 0.0, %v570
  %v572 = vpop.f32.mrf.mxu0
  %v573 = vadd.f32 0.0, %v572
  %574 = vmatmul.bf16.gmra.mxu0 %v554
  %v575 = vpop.f32.mrf.mxu0
  %v576 = vadd.f32 0.0, %v575
  %v577 = vpop.f32.mrf.mxu0
  %v578 = vadd.f32 0.0, %v577
  %579 = vmatmul.bf16.gmra.mxu0 %v555
  %v580 = vpop.f32.mrf.mxu0
  %v581 = vadd.f32 0.0, %v580
  %v582 = vpop.f32.mrf.mxu0
  %v583 = vadd.f32 0.0, %v582
  %584 = vmatmul.bf16.gmra.mxu0 %v556
  %v585 = vpop.f32.mrf.mxu0
  %v586 = vadd.f32 0.0, %v585
  %v587 = vpop.f32.mrf.mxu0
  %v588 = vadd.f32 0.0, %v587
  %589 = vmatmul.bf16.gmra.mxu0 %v557
  %v590 = vpop.f32.mrf.mxu0
  %v591 = vadd.f32 0.0, %v590
  %v592 = vpop.f32.mrf.mxu0
  %v593 = vadd.f32 0.0, %v592
  %594 = vmatmul.bf16.gmra.mxu0 %v558
  %v595 = vpop.f32.mrf.mxu0
  %v596 = vadd.f32 0.0, %v595
  %v597 = vpop.f32.mrf.mxu0
  %v598 = vadd.f32 0.0, %v597
  %599 = vmatmul.bf16.gmra.mxu0 %v559
  %v600 = vpop.f32.mrf.mxu0
  %v601 = vadd.f32 0.0, %v600
  %v602 = vpop.f32.mrf.mxu0
  %v603 = vadd.f32 0.0, %v602
  %604 = vmatmul.bf16.gmra.mxu0 %v560
  %v605 = vpop.f32.mrf.mxu0
  %v606 = vadd.f32 0.0, %v605
  %v607 = vpop.f32.mrf.mxu0
  %v608 = vadd.f32 0.0, %v607
  %609 = vdwg.mxu0
  %v610 = vrcp.pop %v522
  %v611 = vrcp.pop %v524
  %v612 = vrcp.pop %v526
  %v613 = vrcp.pop %v528
  %v614 = vrcp.pop %v530
  %v615 = vrcp.pop %v532
  %v616 = vrcp.pop %v534
  %v617 = vrcp.pop %v536
  %v618 = vrcp.pop %v538
  %v619 = vrcp.pop %v540
  %v620 = vrcp.pop %v542
  %v621 = vrcp.pop %v544
  %v622 = vrcp.pop %v546
  %v623 = vrcp.pop %v548
  %v624 = vrcp.pop %v550
  %v625 = vrcp.pop %v552
  %v626 = vmul.f32 %v571, %v610
  %v627 = vmul.f32 %v573, %v611
  %v628 = vmul.f32 %v576, %v612
  %v629 = vmul.f32 %v578, %v613
  %v630 = vmul.f32 %v581, %v614
  %v631 = vmul.f32 %v583, %v615
  %v632 = vmul.f32 %v586, %v616
  %v633 = vmul.f32 %v588, %v617
  %v634 = vmul.f32 %v591, %v618
  %v635 = vmul.f32 %v593, %v619
  %v636 = vmul.f32 %v596, %v620
  %v637 = vmul.f32 %v598, %v621
  %v638 = vmul.f32 %v601, %v622
  %v639 = vmul.f32 %v603, %v623
  %v640 = vmul.f32 %v606, %v624
  %v641 = vmul.f32 %v608, %v625
  %v643 = vperm.slane %v229, 0
  %v645 = vadd.f32 %v626, %v643
  %v646 = vadd.f32 %v627, %v643
  %v647 = vadd.f32 %v628, %v643
  %v648 = vadd.f32 %v629, %v643
  %v649 = vadd.f32 %v630, %v643
  %v650 = vadd.f32 %v631, %v643
  %v651 = vadd.f32 %v632, %v643
  %v652 = vadd.f32 %v633, %v643
  %v653 = vadd.f32 %v634, %v643
  %v654 = vadd.f32 %v635, %v643
  %v655 = vadd.f32 %v636, %v643
  %v656 = vadd.f32 %v637, %v643
  %v657 = vadd.f32 %v638, %v643
  %v658 = vadd.f32 %v639, %v643
  %v659 = vadd.f32 %v640, %v643
  %v660 = vadd.f32 %v641, %v643
  %v661 = vtanh.pop %v645
  %v662 = vtanh.pop %v646
  %v663 = vtanh.pop %v647
  %v664 = vtanh.pop %v648
  %v665 = vtanh.pop %v649
  %v666 = vtanh.pop %v650
  %v667 = vtanh.pop %v651
  %v668 = vtanh.pop %v652
  %v669 = vtanh.pop %v653
  %v670 = vtanh.pop %v654
  %v671 = vtanh.pop %v655
  %v672 = vtanh.pop %v656
  %v673 = vtanh.pop %v657
  %v674 = vtanh.pop %v658
  %v675 = vtanh.pop %v659
  %v676 = vtanh.pop %v660
  %677 = vst [vmem:[%s6] sm:$0xff] %v661
  %678 = vst [vmem:[%s6 + $0x8] sm:$0xff] %v662
  %679 = vst [vmem:[%s6 + $0x10] sm:$0xff] %v663
  %680 = vst [vmem:[%s6 + $0x18] sm:$0xff] %v664
  %681 = vst [vmem:[%s6 + $0x20] sm:$0xff] %v665
  %682 = vst [vmem:[%s6 + $0x28] sm:$0xff] %v666
  %683 = vst [vmem:[%s6 + $0x30] sm:$0xff] %v667
  %684 = vst [vmem:[%s6 + $0x38] sm:$0xff] %v668
  %685 = vst [vmem:[%s6 + $0x40] sm:$0xff] %v669
  %686 = vst [vmem:[%s6 + $0x48] sm:$0xff] %v670
  %687 = vst [vmem:[%s6 + $0x50] sm:$0xff] %v671
  %688 = vst [vmem:[%s6 + $0x58] sm:$0xff] %v672
  %689 = vst [vmem:[%s6 + $0x60] sm:$0xff] %v673
  %690 = vst [vmem:[%s6 + $0x68] sm:$0xff] %v674
  %691 = vst [vmem:[%s6 + $0x70] sm:$0xff] %v675
  %692 = vst [vmem:[%s6 + $0x78] sm:$0xff] %v676
  // Predicated region
  $region26: #{_breadth_forward.1} parent=0 // pred_check
    _
  $region27: #{_breadth_forward.1} parent=0 // pred_check_branch
    %694 = sbr.rel (0) target = $region29
  $region28: #{_breadth_forward.1} parent=0 // pred_region
    _
  $region29: #{_breadth_forward.1} parent=0 // pred_fallthru
    _
  // Predicated region
  $region30: #{_breadth_forward.1} parent=0 // pred_check
    _
  $region31: #{_breadth_forward.1} parent=0 // pred_check_branch
    %696 = sbr.rel (0) target = $region33
  $region32: #{_breadth_forward.1} parent=0 // pred_region
    _
  $region33: #{_breadth_forward.1} parent=0 // pred_fallthru
    _

// kernel: _breadth_forward.1
$region0: #{_breadth_forward.1}
  #allocation0 [shape = 'u32[]', space=smem, size = 0x4, offset = 0x4, fixed_abs, tag = 'smem constant byte address 0x4 - core index']
  #allocation1 [shape = 'u32[72,128]{1,0:T(1,128)}', space=vmem, size = 0x9000, scoped, tag = 'internal scratch']
  %s0 = inlined_call_operand.vmem [shape: bf16[128,128], index: 0, kind: input, shape index: {}]
  %s1 = inlined_call_operand.vmem [shape: bf16[128,128], index: 1, kind: input, shape index: {}]
  %s2 = inlined_call_operand.vmem [shape: f32[128,1], index: 2, kind: input, shape index: {}]
  %s3 = inlined_call_operand.vmem [shape: f32[1,128], index: 3, kind: input, shape index: {}]
  %s4 = inlined_call_operand.vmem [shape: s8[128,128], index: 4, kind: input, shape index: {}]
  %s5 = inlined_call_operand.vmem [shape: f32[1,128], index: 5, kind: input, shape index: {}]
  %s6 = inlined_call_operand.vmem [shape: f32[128,128], index: 6, kind: output, shape index: {}]
  %s7 = sld [smem:[#allocation0]]
  $region34: #{_breadth_forward.1} parent=0
    _
  %s9 = ssub.s32 1, %s7
  %s10 = scalar_select 0, %s9, %s7
  // Predicated region
  $region2: #{_breadth_forward.1} parent=0 // pred_check
    _
  $region3: #{_breadth_forward.1} parent=0 // pred_check_branch
    %12 = sbr.rel (0) target = $region5
  $region4: #{_breadth_forward.1} parent=0 // pred_region
    _
  $region5: #{_breadth_forward.1} parent=0 // pred_fallthru
    _
  // Predicated region
  $region6: #{_breadth_forward.1} parent=0 // pred_check
    _
  $region7: #{_breadth_forward.1} parent=0 // pred_check_branch
    %14 = sbr.rel (0) target = $region9
  $region8: #{_breadth_forward.1} parent=0 // pred_region
    _
  $region9: #{_breadth_forward.1} parent=0 // pred_fallthru
    _
  // Predicated region
  $region10: #{_breadth_forward.1} parent=0 // pred_check
    _
  $region11: #{_breadth_forward.1} parent=0 // pred_check_branch
    %16 = sbr.rel (0) target = $region13
  $region12: #{_breadth_forward.1} parent=0 // pred_region
    _
  $region13: #{_breadth_forward.1} parent=0 // pred_fallthru
    _
  // Predicated region
  $region14: #{_breadth_forward.1} parent=0 // pred_check
    _
  $region15: #{_breadth_forward.1} parent=0 // pred_check_branch
    %18 = sbr.rel (0) target = $region17
  $region16: #{_breadth_forward.1} parent=0 // pred_region
    _
  $region17: #{_breadth_forward.1} parent=0 // pred_fallthru
    _
  // Predicated region
  $region18: #{_breadth_forward.1} parent=0 // pred_check
    _
  $region19: #{_breadth_forward.1} parent=0 // pred_check_branch
    %20 = sbr.rel (0) target = $region21
  $region20: #{_breadth_forward.1} parent=0 // pred_region
    _
  $region21: #{_breadth_forward.1} parent=0 // pred_fallthru
    _
  // Predicated region
  $region22: #{_breadth_forward.1} parent=0 // pred_check
    _
  $region23: #{_breadth_forward.1} parent=0 // pred_check_branch
    %22 = sbr.rel (0) target = $region25
  $region24: #{_breadth_forward.1} parent=0 // pred_region
    _
  $region25: #{_breadth_forward.1} parent=0 // pred_fallthru
    _
  %v23 = vld [vmem:[%s0] sm:$0xf]
  %v24 = vld [vmem:[%s0 + $0x4] sm:$0xf]
  %v25 = vld [vmem:[%s0 + $0x8] sm:$0xf]
  %v26 = vld [vmem:[%s0 + $0xc] sm:$0xf]
  %v27 = vld [vmem:[%s0 + $0x10] sm:$0xf]
  %v28 = vld [vmem:[%s0 + $0x14] sm:$0xf]
  %v29 = vld [vmem:[%s0 + $0x18] sm:$0xf]
  %v30 = vld [vmem:[%s0 + $0x1c] sm:$0xf]
  %v31 = vld [vmem:[%s0 + $0x20] sm:$0xf]
  %v32 = vld [vmem:[%s0 + $0x24] sm:$0xf]
  %v33 = vld [vmem:[%s0 + $0x28] sm:$0xf]
  %v34 = vld [vmem:[%s0 + $0x2c] sm:$0xf]
  %v35 = vld [vmem:[%s0 + $0x30] sm:$0xf]
  %v36 = vld [vmem:[%s0 + $0x34] sm:$0xf]
  %v37 = vld [vmem:[%s0 + $0x38] sm:$0xf]
  %v38 = vld [vmem:[%s0 + $0x3c] sm:$0xf]
  %v39 = vld [vmem:[%s1] sm:$0xf]
  %v40 = vld [vmem:[%s1 + $0x4] sm:$0xf]
  %v41 = vld [vmem:[%s1 + $0x8] sm:$0xf]
  %v42 = vld [vmem:[%s1 + $0xc] sm:$0xf]
  %v43 = vld [vmem:[%s1 + $0x10] sm:$0xf]
  %v44 = vld [vmem:[%s1 + $0x14] sm:$0xf]
  %v45 = vld [vmem:[%s1 + $0x18] sm:$0xf]
  %v46 = vld [vmem:[%s1 + $0x1c] sm:$0xf]
  %v47 = vld [vmem:[%s1 + $0x20] sm:$0xf]
  %v48 = vld [vmem:[%s1 + $0x24] sm:$0xf]
  %v49 = vld [vmem:[%s1 + $0x28] sm:$0xf]
  %v50 = vld [vmem:[%s1 + $0x2c] sm:$0xf]
  %v51 = vld [vmem:[%s1 + $0x30] sm:$0xf]
  %v52 = vld [vmem:[%s1 + $0x34] sm:$0xf]
  %v53 = vld [vmem:[%s1 + $0x38] sm:$0xf]
  %v54 = vld [vmem:[%s1 + $0x3c] sm:$0xf]
  %v71 = vunpack.c.l.b16 %v23
  %v72 = vunpack.c.l.b16 %v24
  %v73 = vunpack.c.l.b16 %v25
  %v74 = vunpack.c.l.b16 %v26
  %v75 = vunpack.c.l.b16 %v27
  %v76 = vunpack.c.l.b16 %v28
  %v77 = vunpack.c.l.b16 %v29
  %v78 = vunpack.c.l.b16 %v30
  %v79 = vunpack.c.l.b16 %v31
  %v80 = vunpack.c.l.b16 %v32
  %v81 = vunpack.c.l.b16 %v33
  %v82 = vunpack.c.l.b16 %v34
  %v83 = vunpack.c.l.b16 %v35
  %v84 = vunpack.c.l.b16 %v36
  %v85 = vunpack.c.l.b16 %v37
  %v86 = vunpack.c.l.b16 %v38
  %v87 = vpack.c.b16 %v72, %v71
  %v88 = vpack.c.b16 %v74, %v73
  %v89 = vpack.c.b16 %v76, %v75
  %v90 = vpack.c.b16 %v78, %v77
  %v91 = vpack.c.b16 %v80, %v79
  %v92 = vpack.c.b16 %v82, %v81
  %v93 = vpack.c.b16 %v84, %v83
  %v94 = vpack.c.b16 %v86, %v85
  %v119 = vunpack.c.l.b16 %v39
  %v120 = vunpack.c.l.b16 %v40
  %v121 = vunpack.c.l.b16 %v41
  %v122 = vunpack.c.l.b16 %v42
  %v123 = vunpack.c.l.b16 %v43
  %v124 = vunpack.c.l.b16 %v44
  %v125 = vunpack.c.l.b16 %v45
  %v126 = vunpack.c.l.b16 %v46
  %v127 = vunpack.c.l.b16 %v47
  %v128 = vunpack.c.l.b16 %v48
  %v129 = vunpack.c.l.b16 %v49
  %v130 = vunpack.c.l.b16 %v50
  %v131 = vunpack.c.l.b16 %v51
  %v132 = vunpack.c.l.b16 %v52
  %v133 = vunpack.c.l.b16 %v53
  %v134 = vunpack.c.l.b16 %v54
  %v135 = vpack.c.b16 %v120, %v119
  %v136 = vpack.c.b16 %v122, %v121
  %v137 = vpack.c.b16 %v124, %v123
  %v138 = vpack.c.b16 %v126, %v125
  %v139 = vpack.c.b16 %v128, %v127
  %v140 = vpack.c.b16 %v130, %v129
  %v141 = vpack.c.b16 %v132, %v131
  %v142 = vpack.c.b16 %v134, %v133
  %151 = vmatpush.bf16.msra.mxu0 %v142
  %152 = vmatpush.bf16.msra.mxu0 %v141
  %153 = vmatpush.bf16.msra.mxu0 %v140
  %154 = vmatpush.bf16.msra.mxu0 %v139
  %155 = vmatpush.bf16.msra.mxu0 %v138
  %156 = vmatpush.bf16.msra.mxu0 %v137
  %157 = vmatpush.bf16.msra.mxu0 %v136
  %158 = vmatpush.bf16.msra.mxu0 %v135
  %159 = vmatmul.bf16.gmra.mxu0 %v87
  %v160 = vpop.f32.mrf.mxu0
  %v161 = vadd.f32 0.0, %v160
  %v162 = vpop.f32.mrf.mxu0
  %v163 = vadd.f32 0.0, %v162
  %164 = vmatmul.bf16.gmra.mxu0 %v88
  %v165 = vpop.f32.mrf.mxu0
  %v166 = vadd.f32 0.0, %v165
  %v167 = vpop.f32.mrf.mxu0
  %v168 = vadd.f32 0.0, %v167
  %169 = vmatmul.bf16.gmra.mxu0 %v89
  %v170 = vpop.f32.mrf.mxu0
  %v171 = vadd.f32 0.0, %v170
  %v172 = vpop.f32.mrf.mxu0
  %v173 = vadd.f32 0.0, %v172
  %174 = vmatmul.bf16.gmra.mxu0 %v90
  %v175 = vpop.f32.mrf.mxu0
  %v176 = vadd.f32 0.0, %v175
  %v177 = vpop.f32.mrf.mxu0
  %v178 = vadd.f32 0.0, %v177
  %179 = vmatmul.bf16.gmra.mxu0 %v91
  %v180 = vpop.f32.mrf.mxu0
  %v181 = vadd.f32 0.0, %v180
  %v182 = vpop.f32.mrf.mxu0
  %v183 = vadd.f32 0.0, %v182
  %184 = vmatmul.bf16.gmra.mxu0 %v92
  %v185 = vpop.f32.mrf.mxu0
  %v186 = vadd.f32 0.0, %v185
  %v187 = vpop.f32.mrf.mxu0
  %v188 = vadd.f32 0.0, %v187
  %189 = vmatmul.bf16.gmra.mxu0 %v93
  %v190 = vpop.f32.mrf.mxu0
  %v191 = vadd.f32 0.0, %v190
  %v192 = vpop.f32.mrf.mxu0
  %v193 = vadd.f32 0.0, %v192
  %194 = vmatmul.bf16.gmra.mxu0 %v94
  %v195 = vpop.f32.mrf.mxu0
  %v196 = vadd.f32 0.0, %v195
  %v197 = vpop.f32.mrf.mxu0
  %v198 = vadd.f32 0.0, %v197
  %199 = vdwg.mxu0
  %v200 = vpack.c.bf16 %v163, %v161
  %v201 = vpack.c.bf16 %v168, %v166
  %v202 = vpack.c.bf16 %v173, %v171
  %v203 = vpack.c.bf16 %v178, %v176
  %v204 = vpack.c.bf16 %v183, %v181
  %v205 = vpack.c.bf16 %v188, %v186
  %v206 = vpack.c.bf16 %v193, %v191
  %v207 = vpack.c.bf16 %v198, %v196
  %v208 = vld [vmem:[%s2] sm:$0xff]
  %v209 = vld [vmem:[%s2 + $0x8] sm:$0xff]
  %v210 = vld [vmem:[%s2 + $0x10] sm:$0xff]
  %v211 = vld [vmem:[%s2 + $0x18] sm:$0xff]
  %v212 = vld [vmem:[%s2 + $0x20] sm:$0xff]
  %v213 = vld [vmem:[%s2 + $0x28] sm:$0xff]
  %v214 = vld [vmem:[%s2 + $0x30] sm:$0xff]
  %v215 = vld [vmem:[%s2 + $0x38] sm:$0xff]
  %v216 = vld [vmem:[%s2 + $0x40] sm:$0xff]
  %v217 = vld [vmem:[%s2 + $0x48] sm:$0xff]
  %v218 = vld [vmem:[%s2 + $0x50] sm:$0xff]
  %v219 = vld [vmem:[%s2 + $0x58] sm:$0xff]
  %v220 = vld [vmem:[%s2 + $0x60] sm:$0xff]
  %v221 = vld [vmem:[%s2 + $0x68] sm:$0xff]
  %v222 = vld [vmem:[%s2 + $0x70] sm:$0xff]
  %v223 = vld [vmem:[%s2 + $0x78] sm:$0xff]
  %v224 = vld [vmem:[%s3] sm:$0x1]
  %v225 = vld [vmem:[%s4] sm:$0xff]
  %v226 = vld [vmem:[%s4 + $0x8] sm:$0xff]
  %v227 = vld [vmem:[%s4 + $0x10] sm:$0xff]
  %v228 = vld [vmem:[%s4 + $0x18] sm:$0xff]
  %v229 = vld [vmem:[%s5] sm:$0x1]
  %v230 = vunpack.c.0.s8 %v225
  %v231 = vunpack.c.1.s8 %v225
  %v232 = vunpack.c.2.s8 %v225
  %v233 = vunpack.c.3.s8 %v225
  %v234 = vunpack.c.0.s8 %v226
  %v235 = vunpack.c.1.s8 %v226
  %v236 = vunpack.c.2.s8 %v226
  %v237 = vunpack.c.3.s8 %v226
  %v238 = vunpack.c.0.s8 %v227
  %v239 = vunpack.c.1.s8 %v227
  %v240 = vunpack.c.2.s8 %v227
  %v241 = vunpack.c.3.s8 %v227
  %v242 = vunpack.c.0.s8 %v228
  %v243 = vunpack.c.1.s8 %v228
  %v244 = vunpack.c.2.s8 %v228
  %v245 = vunpack.c.3.s8 %v228
  %v246 = vcvt.s32.f32 %v230
  %v247 = vcvt.s32.f32 %v231
  %v248 = vcvt.s32.f32 %v232
  %v249 = vcvt.s32.f32 %v233
  %v250 = vcvt.s32.f32 %v234
  %v251 = vcvt.s32.f32 %v235
  %v252 = vcvt.s32.f32 %v236
  %v253 = vcvt.s32.f32 %v237
  %v254 = vcvt.s32.f32 %v238
  %v255 = vcvt.s32.f32 %v239
  %v256 = vcvt.s32.f32 %v240
  %v257 = vcvt.s32.f32 %v241
  %v258 = vcvt.s32.f32 %v242
  %v259 = vcvt.s32.f32 %v243
  %v260 = vcvt.s32.f32 %v244
  %v261 = vcvt.s32.f32 %v245
  %263 = vset.pattern.permute.xlu0 0
  %264 = vperm.xlu0 %263, %v208
  %v265 = vpop.permute.xlu0 %264
  %268 = vset.pattern.permute.xlu0 0
  %269 = vperm.xlu0 %268, %v209
  %v270 = vpop.permute.xlu0 %269
  %273 = vset.pattern.permute.xlu0 0
  %274 = vperm.xlu0 %273, %v210
  %v275 = vpop.permute.xlu0 %274
  %278 = vset.pattern.permute.xlu0 0
  %279 = vperm.xlu0 %278, %v211
  %v280 = vpop.permute.xlu0 %279
  %283 = vset.pattern.permute.xlu0 0
  %284 = vperm.xlu0 %283, %v212
  %v285 = vpop.permute.xlu0 %284
  %288 = vset.pattern.permute.xlu0 0
  %289 = vperm.xlu0 %288, %v213
  %v290 = vpop.permute.xlu0 %289
  %293 = vset.pattern.permute.xlu0 0
  %294 = vperm.xlu0 %293, %v214
  %v295 = vpop.permute.xlu0 %294
  %298 = vset.pattern.permute.xlu0 0
  %299 = vperm.xlu0 %298, %v215
  %v300 = vpop.permute.xlu0 %299
  %303 = vset.pattern.permute.xlu0 0
  %304 = vperm.xlu0 %303, %v216
  %v305 = vpop.permute.xlu0 %304
  %308 = vset.pattern.permute.xlu0 0
  %309 = vperm.xlu0 %308, %v217
  %v310 = vpop.permute.xlu0 %309
  %313 = vset.pattern.permute.xlu0 0
  %314 = vperm.xlu0 %313, %v218
  %v315 = vpop.permute.xlu0 %314
  %318 = vset.pattern.permute.xlu0 0
  %319 = vperm.xlu0 %318, %v219
  %v320 = vpop.permute.xlu0 %319
  %323 = vset.pattern.permute.xlu0 0
  %324 = vperm.xlu0 %323, %v220
  %v325 = vpop.permute.xlu0 %324
  %328 = vset.pattern.permute.xlu0 0
  %329 = vperm.xlu0 %328, %v221
  %v330 = vpop.permute.xlu0 %329
  %333 = vset.pattern.permute.xlu0 0
  %334 = vperm.xlu0 %333, %v222
  %v335 = vpop.permute.xlu0 %334
  %338 = vset.pattern.permute.xlu0 0
  %339 = vperm.xlu0 %338, %v223
  %v340 = vpop.permute.xlu0 %339
  %v343 = vperm.slane %v224, 0
  %v345 = vadd.f32 %v265, %v343
  %v346 = vadd.f32 %v270, %v343
  %v347 = vadd.f32 %v275, %v343
  %v348 = vadd.f32 %v280, %v343
  %v349 = vadd.f32 %v285, %v343
  %v350 = vadd.f32 %v290, %v343
  %v351 = vadd.f32 %v295, %v343
  %v352 = vadd.f32 %v300, %v343
  %v353 = vadd.f32 %v305, %v343
  %v354 = vadd.f32 %v310, %v343
  %v355 = vadd.f32 %v315, %v343
  %v356 = vadd.f32 %v320, %v343
  %v357 = vadd.f32 %v325, %v343
  %v358 = vadd.f32 %v330, %v343
  %v359 = vadd.f32 %v335, %v343
  %v360 = vadd.f32 %v340, %v343
  %v361 = vmul.f32 %v345, 0.2
  %v362 = vmul.f32 %v346, 0.2
  %v363 = vmul.f32 %v347, 0.2
  %v364 = vmul.f32 %v348, 0.2
  %v365 = vmul.f32 %v349, 0.2
  %v366 = vmul.f32 %v350, 0.2
  %v367 = vmul.f32 %v351, 0.2
  %v368 = vmul.f32 %v352, 0.2
  %v369 = vmul.f32 %v353, 0.2
  %v370 = vmul.f32 %v354, 0.2
  %v371 = vmul.f32 %v355, 0.2
  %v372 = vmul.f32 %v356, 0.2
  %v373 = vmul.f32 %v357, 0.2
  %v374 = vmul.f32 %v358, 0.2
  %v375 = vmul.f32 %v359, 0.2
  %v376 = vmul.f32 %v360, 0.2
  %v377 = vmax.f32 %v345, %v361
  %v378 = vmax.f32 %v346, %v362
  %v379 = vmax.f32 %v347, %v363
  %v380 = vmax.f32 %v348, %v364
  %v381 = vmax.f32 %v349, %v365
  %v382 = vmax.f32 %v350, %v366
  %v383 = vmax.f32 %v351, %v367
  %v384 = vmax.f32 %v352, %v368
  %v385 = vmax.f32 %v353, %v369
  %v386 = vmax.f32 %v354, %v370
  %v387 = vmax.f32 %v355, %v371
  %v388 = vmax.f32 %v356, %v372
  %v389 = vmax.f32 %v357, %v373
  %v390 = vmax.f32 %v358, %v374
  %v391 = vmax.f32 %v359, %v375
  %v392 = vmax.f32 %v360, %v376
  %vm393 = vcmp.gt.f32.partialorder %v246, 0.0
  %vm394 = vcmp.gt.f32.partialorder %v247, 0.0
  %vm395 = vcmp.gt.f32.partialorder %v248, 0.0
  %vm396 = vcmp.gt.f32.partialorder %v249, 0.0
  %vm397 = vcmp.gt.f32.partialorder %v250, 0.0
  %vm398 = vcmp.gt.f32.partialorder %v251, 0.0
  %vm399 = vcmp.gt.f32.partialorder %v252, 0.0
  %vm400 = vcmp.gt.f32.partialorder %v253, 0.0
  %vm401 = vcmp.gt.f32.partialorder %v254, 0.0
  %vm402 = vcmp.gt.f32.partialorder %v255, 0.0
  %vm403 = vcmp.gt.f32.partialorder %v256, 0.0
  %vm404 = vcmp.gt.f32.partialorder %v257, 0.0
  %vm405 = vcmp.gt.f32.partialorder %v258, 0.0
  %vm406 = vcmp.gt.f32.partialorder %v259, 0.0
  %vm407 = vcmp.gt.f32.partialorder %v260, 0.0
  %vm408 = vcmp.gt.f32.partialorder %v261, 0.0
  %v409 = vsel %vm393, %v377, -1e+30
  %v410 = vsel %vm394, %v378, -1e+30
  %v411 = vsel %vm395, %v379, -1e+30
  %v412 = vsel %vm396, %v380, -1e+30
  %v413 = vsel %vm397, %v381, -1e+30
  %v414 = vsel %vm398, %v382, -1e+30
  %v415 = vsel %vm399, %v383, -1e+30
  %v416 = vsel %vm400, %v384, -1e+30
  %v417 = vsel %vm401, %v385, -1e+30
  %v418 = vsel %vm402, %v386, -1e+30
  %v419 = vsel %vm403, %v387, -1e+30
  %v420 = vsel %vm404, %v388, -1e+30
  %v421 = vsel %vm405, %v389, -1e+30
  %v422 = vsel %vm406, %v390, -1e+30
  %v423 = vsel %vm407, %v391, -1e+30
  %v424 = vsel %vm408, %v392, -1e+30
  %425 = vmax.xlane.f32.xlu0 %v409
  %v426 = vpop.xlane.xlu0 %425
  %427 = vmax.xlane.f32.xlu0 %v410
  %v428 = vpop.xlane.xlu0 %427
  %429 = vmax.xlane.f32.xlu0 %v411
  %v430 = vpop.xlane.xlu0 %429
  %431 = vmax.xlane.f32.xlu0 %v412
  %v432 = vpop.xlane.xlu0 %431
  %433 = vmax.xlane.f32.xlu0 %v413
  %v434 = vpop.xlane.xlu0 %433
  %435 = vmax.xlane.f32.xlu0 %v414
  %v436 = vpop.xlane.xlu0 %435
  %437 = vmax.xlane.f32.xlu0 %v415
  %v438 = vpop.xlane.xlu0 %437
  %439 = vmax.xlane.f32.xlu0 %v416
  %v440 = vpop.xlane.xlu0 %439
  %441 = vmax.xlane.f32.xlu0 %v417
  %v442 = vpop.xlane.xlu0 %441
  %443 = vmax.xlane.f32.xlu0 %v418
  %v444 = vpop.xlane.xlu0 %443
  %445 = vmax.xlane.f32.xlu0 %v419
  %v446 = vpop.xlane.xlu0 %445
  %447 = vmax.xlane.f32.xlu0 %v420
  %v448 = vpop.xlane.xlu0 %447
  %449 = vmax.xlane.f32.xlu0 %v421
  %v450 = vpop.xlane.xlu0 %449
  %451 = vmax.xlane.f32.xlu0 %v422
  %v452 = vpop.xlane.xlu0 %451
  %453 = vmax.xlane.f32.xlu0 %v423
  %v454 = vpop.xlane.xlu0 %453
  %455 = vmax.xlane.f32.xlu0 %v424
  %v456 = vpop.xlane.xlu0 %455
  %v457 = vsub.f32 %v409, %v426
  %v458 = vsub.f32 %v410, %v428
  %v459 = vsub.f32 %v411, %v430
  %v460 = vsub.f32 %v412, %v432
  %v461 = vsub.f32 %v413, %v434
  %v462 = vsub.f32 %v414, %v436
  %v463 = vsub.f32 %v415, %v438
  %v464 = vsub.f32 %v416, %v440
  %v465 = vsub.f32 %v417, %v442
  %v466 = vsub.f32 %v418, %v444
  %v467 = vsub.f32 %v419, %v446
  %v468 = vsub.f32 %v420, %v448
  %v469 = vsub.f32 %v421, %v450
  %v470 = vsub.f32 %v422, %v452
  %v471 = vsub.f32 %v423, %v454
  %v472 = vsub.f32 %v424, %v456
  %v473 = vmul.f32 %v457, 1.442695
  %v474 = vpow.pop %v473
  %v475 = vmul.f32 %v458, 1.442695
  %v476 = vpow.pop %v475
  %v477 = vmul.f32 %v459, 1.442695
  %v478 = vpow.pop %v477
  %v479 = vmul.f32 %v460, 1.442695
  %v480 = vpow.pop %v479
  %v481 = vmul.f32 %v461, 1.442695
  %v482 = vpow.pop %v481
  %v483 = vmul.f32 %v462, 1.442695
  %v484 = vpow.pop %v483
  %v485 = vmul.f32 %v463, 1.442695
  %v486 = vpow.pop %v485
  %v487 = vmul.f32 %v464, 1.442695
  %v488 = vpow.pop %v487
  %v489 = vmul.f32 %v465, 1.442695
  %v490 = vpow.pop %v489
  %v491 = vmul.f32 %v466, 1.442695
  %v492 = vpow.pop %v491
  %v493 = vmul.f32 %v467, 1.442695
  %v494 = vpow.pop %v493
  %v495 = vmul.f32 %v468, 1.442695
  %v496 = vpow.pop %v495
  %v497 = vmul.f32 %v469, 1.442695
  %v498 = vpow.pop %v497
  %v499 = vmul.f32 %v470, 1.442695
  %v500 = vpow.pop %v499
  %v501 = vmul.f32 %v471, 1.442695
  %v502 = vpow.pop %v501
  %v503 = vmul.f32 %v472, 1.442695
  %v504 = vpow.pop %v503
  %v505 = vmul.f32 %v246, %v474
  %v506 = vmul.f32 %v247, %v476
  %v507 = vmul.f32 %v248, %v478
  %v508 = vmul.f32 %v249, %v480
  %v509 = vmul.f32 %v250, %v482
  %v510 = vmul.f32 %v251, %v484
  %v511 = vmul.f32 %v252, %v486
  %v512 = vmul.f32 %v253, %v488
  %v513 = vmul.f32 %v254, %v490
  %v514 = vmul.f32 %v255, %v492
  %v515 = vmul.f32 %v256, %v494
  %v516 = vmul.f32 %v257, %v496
  %v517 = vmul.f32 %v258, %v498
  %v518 = vmul.f32 %v259, %v500
  %v519 = vmul.f32 %v260, %v502
  %v520 = vmul.f32 %v261, %v504
  %521 = vadd.xlane.f32.xlu0 %v505
  %v522 = vpop.xlane.xlu0 %521
  %523 = vadd.xlane.f32.xlu0 %v506
  %v524 = vpop.xlane.xlu0 %523
  %525 = vadd.xlane.f32.xlu0 %v507
  %v526 = vpop.xlane.xlu0 %525
  %527 = vadd.xlane.f32.xlu0 %v508
  %v528 = vpop.xlane.xlu0 %527
  %529 = vadd.xlane.f32.xlu0 %v509
  %v530 = vpop.xlane.xlu0 %529
  %531 = vadd.xlane.f32.xlu0 %v510
  %v532 = vpop.xlane.xlu0 %531
  %533 = vadd.xlane.f32.xlu0 %v511
  %v534 = vpop.xlane.xlu0 %533
  %535 = vadd.xlane.f32.xlu0 %v512
  %v536 = vpop.xlane.xlu0 %535
  %537 = vadd.xlane.f32.xlu0 %v513
  %v538 = vpop.xlane.xlu0 %537
  %539 = vadd.xlane.f32.xlu0 %v514
  %v540 = vpop.xlane.xlu0 %539
  %541 = vadd.xlane.f32.xlu0 %v515
  %v542 = vpop.xlane.xlu0 %541
  %543 = vadd.xlane.f32.xlu0 %v516
  %v544 = vpop.xlane.xlu0 %543
  %545 = vadd.xlane.f32.xlu0 %v517
  %v546 = vpop.xlane.xlu0 %545
  %547 = vadd.xlane.f32.xlu0 %v518
  %v548 = vpop.xlane.xlu0 %547
  %549 = vadd.xlane.f32.xlu0 %v519
  %v550 = vpop.xlane.xlu0 %549
  %551 = vadd.xlane.f32.xlu0 %v520
  %v552 = vpop.xlane.xlu0 %551
  %v553 = vpack.c.bf16 %v506, %v505
  %v554 = vpack.c.bf16 %v508, %v507
  %v555 = vpack.c.bf16 %v510, %v509
  %v556 = vpack.c.bf16 %v512, %v511
  %v557 = vpack.c.bf16 %v514, %v513
  %v558 = vpack.c.bf16 %v516, %v515
  %v559 = vpack.c.bf16 %v518, %v517
  %v560 = vpack.c.bf16 %v520, %v519
  %561 = vmatpush.bf16.msra.mxu0 %v207
  %562 = vmatpush.bf16.msra.mxu0 %v206
  %563 = vmatpush.bf16.msra.mxu0 %v205
  %564 = vmatpush.bf16.msra.mxu0 %v204
  %565 = vmatpush.bf16.msra.mxu0 %v203
  %566 = vmatpush.bf16.msra.mxu0 %v202
  %567 = vmatpush.bf16.msra.mxu0 %v201
  %568 = vmatpush.bf16.msra.mxu0 %v200
  %569 = vmatmul.bf16.gmra.mxu0 %v553
  %v570 = vpop.f32.mrf.mxu0
  %v571 = vadd.f32 0.0, %v570
  %v572 = vpop.f32.mrf.mxu0
  %v573 = vadd.f32 0.0, %v572
  %574 = vmatmul.bf16.gmra.mxu0 %v554
  %v575 = vpop.f32.mrf.mxu0
  %v576 = vadd.f32 0.0, %v575
  %v577 = vpop.f32.mrf.mxu0
  %v578 = vadd.f32 0.0, %v577
  %579 = vmatmul.bf16.gmra.mxu0 %v555
  %v580 = vpop.f32.mrf.mxu0
  %v581 = vadd.f32 0.0, %v580
  %v582 = vpop.f32.mrf.mxu0
  %v583 = vadd.f32 0.0, %v582
  %584 = vmatmul.bf16.gmra.mxu0 %v556
  %v585 = vpop.f32.mrf.mxu0
  %v586 = vadd.f32 0.0, %v585
  %v587 = vpop.f32.mrf.mxu0
  %v588 = vadd.f32 0.0, %v587
  %589 = vmatmul.bf16.gmra.mxu0 %v557
  %v590 = vpop.f32.mrf.mxu0
  %v591 = vadd.f32 0.0, %v590
  %v592 = vpop.f32.mrf.mxu0
  %v593 = vadd.f32 0.0, %v592
  %594 = vmatmul.bf16.gmra.mxu0 %v558
  %v595 = vpop.f32.mrf.mxu0
  %v596 = vadd.f32 0.0, %v595
  %v597 = vpop.f32.mrf.mxu0
  %v598 = vadd.f32 0.0, %v597
  %599 = vmatmul.bf16.gmra.mxu0 %v559
  %v600 = vpop.f32.mrf.mxu0
  %v601 = vadd.f32 0.0, %v600
  %v602 = vpop.f32.mrf.mxu0
  %v603 = vadd.f32 0.0, %v602
  %604 = vmatmul.bf16.gmra.mxu0 %v560
  %v605 = vpop.f32.mrf.mxu0
  %v606 = vadd.f32 0.0, %v605
  %v607 = vpop.f32.mrf.mxu0
  %v608 = vadd.f32 0.0, %v607
  %609 = vdwg.mxu0
  %v610 = vrcp.pop %v522
  %v611 = vrcp.pop %v524
  %v612 = vrcp.pop %v526
  %v613 = vrcp.pop %v528
  %v614 = vrcp.pop %v530
  %v615 = vrcp.pop %v532
  %v616 = vrcp.pop %v534
  %v617 = vrcp.pop %v536
  %v618 = vrcp.pop %v538
  %v619 = vrcp.pop %v540
  %v620 = vrcp.pop %v542
  %v621 = vrcp.pop %v544
  %v622 = vrcp.pop %v546
  %v623 = vrcp.pop %v548
  %v624 = vrcp.pop %v550
  %v625 = vrcp.pop %v552
  %v626 = vmul.f32 %v571, %v610
  %v627 = vmul.f32 %v573, %v611
  %v628 = vmul.f32 %v576, %v612
  %v629 = vmul.f32 %v578, %v613
  %v630 = vmul.f32 %v581, %v614
  %v631 = vmul.f32 %v583, %v615
  %v632 = vmul.f32 %v586, %v616
  %v633 = vmul.f32 %v588, %v617
  %v634 = vmul.f32 %v591, %v618
  %v635 = vmul.f32 %v593, %v619
  %v636 = vmul.f32 %v596, %v620
  %v637 = vmul.f32 %v598, %v621
  %v638 = vmul.f32 %v601, %v622
  %v639 = vmul.f32 %v603, %v623
  %v640 = vmul.f32 %v606, %v624
  %v641 = vmul.f32 %v608, %v625
  %v643 = vperm.slane %v229, 0
  %v645 = vadd.f32 %v626, %v643
  %v646 = vadd.f32 %v627, %v643
  %v647 = vadd.f32 %v628, %v643
  %v648 = vadd.f32 %v629, %v643
  %v649 = vadd.f32 %v630, %v643
  %v650 = vadd.f32 %v631, %v643
  %v651 = vadd.f32 %v632, %v643
  %v652 = vadd.f32 %v633, %v643
  %v653 = vadd.f32 %v634, %v643
  %v654 = vadd.f32 %v635, %v643
  %v655 = vadd.f32 %v636, %v643
  %v656 = vadd.f32 %v637, %v643
  %v657 = vadd.f32 %v638, %v643
  %v658 = vadd.f32 %v639, %v643
  %v659 = vadd.f32 %v640, %v643
  %v660 = vadd.f32 %v641, %v643
  %v661 = vtanh.pop %v645
  %v662 = vtanh.pop %v646
  %v663 = vtanh.pop %v647
  %v664 = vtanh.pop %v648
  %v665 = vtanh.pop %v649
  %v666 = vtanh.pop %v650
  %v667 = vtanh.pop %v651
  %v668 = vtanh.pop %v652
  %v669 = vtanh.pop %v653
  %v670 = vtanh.pop %v654
  %v671 = vtanh.pop %v655
  %v672 = vtanh.pop %v656
  %v673 = vtanh.pop %v657
  %v674 = vtanh.pop %v658
  %v675 = vtanh.pop %v659
  %v676 = vtanh.pop %v660
  %677 = vst [vmem:[%s6] sm:$0xff] %v661
  %678 = vst [vmem:[%s6 + $0x8] sm:$0xff] %v662
  %679 = vst [vmem:[%s6 + $0x10] sm:$0xff] %v663
  %680 = vst [vmem:[%s6 + $0x18] sm:$0xff] %v664
  %681 = vst [vmem:[%s6 + $0x20] sm:$0xff] %v665
  %682 = vst [vmem:[%s6 + $0x28] sm:$0xff] %v666
  %683 = vst [vmem:[%s6 + $0x30] sm:$0xff] %v667
  %684 = vst [vmem:[%s6 + $0x38] sm:$0xff] %v668
  %685 = vst [vmem:[%s6 + $0x40] sm:$0xff] %v669
  %686 = vst [vmem:[%s6 + $0x48] sm:$0xff] %v670
  %687 = vst [vmem:[%s6 + $0x50] sm:$0xff] %v671
  %688 = vst [vmem:[%s6 + $0x58] sm:$0xff] %v672
  %689 = vst [vmem:[%s6 + $0x60] sm:$0xff] %v673
  %690 = vst [vmem:[%s6 + $0x68] sm:$0xff] %v674
  %691 = vst [vmem:[%s6 + $0x70] sm:$0xff] %v675
  %692 = vst [vmem:[%s6 + $0x78] sm:$0xff] %v676
  // Predicated region
  $region26: #{_breadth_forward.1} parent=0 // pred_check
    _
  $region27: #{_breadth_forward.1} parent=0 // pred_check_branch
    %694 = sbr.rel (0) target = $region29
  $region28: #{_breadth_forward.1} parent=0 // pred_region
    _
  $region29: #{_breadth_forward.1} parent=0 // pred_fallthru
    _
  // Predicated region
  $region30: #{_breadth_forward.1} parent=0 // pred_check
    _
  $region31: #{_breadth_forward.1} parent=0 // pred_check_branch
    %696 = sbr.rel (0) target = $region33
  $region32: #{_breadth_forward.1} parent=0 // pred_region
    _
  $region33: #{_breadth_forward.1} parent=0 // pred_fallthru
    _

</llo_original>
